<compile_context>
chip_gen: v7x
topology: tpu7x:2x2x1
jax: 0.10.0
libtpu: 0.0.40
codegen_flags: <defaults>
</compile_context>

<pallas_src>
import jax
import jax.numpy as jnp
from jax.experimental import pallas as pl
from jax.experimental.pallas import tpu as pltpu

# ---------------- configuration (small, consistent with the module) -----------
B = 2             # batch size (== number of ROIs; ROI i belongs to image i)
IMG_C = 4         # input image channels (real model: 3)
IMG_H = IMG_W = 16
C_BB = 64         # stand-in backbone output channels (real model: 2048)
C_CUSTOM = 32     # custom-layer output channels (real model: 512)
POOL = 5          # RoIAlign output size (5, 5)
P2 = POOL * POOL
NUM_CLASSES = 10
OUT_PAD = 128     # lane-dense padded class dim (sliced back in the wrapper)
BN_EPS = 1e-5
MAX_GRID = 8      # static bound on the adaptive sampling grid; with H=W=16 and
                  # P=5 the true grid is ceil(16/5)=4 <= MAX_GRID.


# ---------------- fused forward kernel -----------------------------------------
def _fused_forward_kernel(x_ref, wbb_ref, bbb_ref, wcu_ref, bcu_ref,
                          wroi_ref, wcls_ref, mdiag_ref, gsel_ref, bcls_ref,
                          o_ref):
    """Whole forward pass for all ROIs in ONE grid step.

    Stages (all intermediates stay in VMEM / vregs):
      stand-in backbone 1x1conv+BN+ReLU  -> MXU matmul, batched over B*H*W
      custom layer      1x1conv+BN+ReLU  -> MXU matmul, batched over B*H*W
      RoIAlign(5x5) as (H*W, P*P) matmul -> MXU matmul per ROI
      Linear classifier                  -> one MXU contraction + diag extract
    """
    n_rois = x_ref.shape[0]
    hw = x_ref.shape[2]

    # ---- 1x1 convs with folded BatchNorm: channels on sublanes, B*H*W on lanes
    x_all = jnp.concatenate([x_ref[b] for b in range(n_rois)], axis=1)   # (Cin, B*HW)
    h_all = jnp.dot(wbb_ref[...], x_all, preferred_element_type=jnp.float32)
    h_all = jnp.maximum(h_all + bbb_ref[...], 0.0)                       # (C_BB, B*HW)
    f_all = jnp.dot(wcu_ref[...], h_all, preferred_element_type=jnp.float32)
    f_all = jnp.maximum(f_all + bcu_ref[...], 0.0)                       # (C_CUSTOM, B*HW)

    wcls = wcls_ref[...]      # (K*P2, C)      classifier weight, permuted at init
    mdiag = mdiag_ref[...]    # (K*P2, P2)     tile(eye(P2), (K, 1))
    gsel = gsel_ref[...]      # (K*P2, OUT_PAD) class one-hot group selector

    rows = []
    for b in range(n_rois):                       # static unroll, n_rois == 2
        f = f_all[:, b * hw:(b + 1) * hw]         # (C, HW), lane-tile-aligned slice
        # RoIAlign as a single MXU matmul against precomputed bilinear weights
        pooled = jnp.dot(f, wroi_ref[b],
                         preferred_element_type=jnp.float32)             # (C, P2)
        # classifier: logits[k] = sum_{c,p} pooled[c,p] * W[k,c,p] + bias[k]
        # one MXU contraction over C, then diagonal extraction over P2 via the
        # constant eye-tile mask, then a class-group sublane reduce. No per-class
        # loop, no in-kernel reshape.
        u = jnp.dot(wcls, pooled, preferred_element_type=jnp.float32)    # (K*P2, P2)
        rs = jnp.sum(u * mdiag, axis=1, keepdims=True)                   # (K*P2, 1)
        rows.append(jnp.sum(rs * gsel, axis=0, keepdims=True))           # (1, OUT_PAD)

    out = jnp.concatenate(rows, axis=0) + bcls_ref[...]                  # (B, OUT_PAD)
    o_ref[...] = out.astype(o_ref.dtype)


# ---------------- RoIAlign interpolation weights (pure arithmetic, no gathers) -
def build_roi_interp_weights_t(rois_xyxy, H, W, P=POOL, sampling_ratio=-1,
                               max_grid=MAX_GRID):
    """Separable torchvision-RoIAlign (aligned=False) bilinear weights.

    rois_xyxy: (N, 4) boxes (x1, y1, x2, y2) already in feature-map coords.
    Returns  : (N, H*W, P*P) float32 such that, for channels-on-sublanes
               features f[n] of shape (C, H*W),
                   pooled[n] = f[n] @ weights[n]      # (C, P*P), p = py*P + px
    Built with iota / compare arithmetic only (no gathers); the pooling itself
    is an MXU matmul inside the fused Pallas kernel.
    """
    def axis_weights(start, length, grid_n, size):
        bin_sz = length / P
        pidx = jnp.arange(P, dtype=jnp.float32)[:, None]             # (P, 1)
        gidx = jnp.arange(max_grid, dtype=jnp.float32)[None, :]      # (1, G)
        coord = start + pidx * bin_sz + (gidx + 0.5) * bin_sz / grid_n
        valid = gidx < grid_n                                        # real samples
        oob = (coord < -1.0) | (coord > size)                        # torchvision skip rule
        c = jnp.maximum(coord, 0.0)
        low = jnp.floor(c)
        clamp_hi = low >= size - 1
        low = jnp.where(clamp_hi, size - 1.0, low)
        high = jnp.where(clamp_hi, size - 1.0, low + 1.0)
        c = jnp.where(clamp_hi, jnp.float32(size - 1), c)
        frac = c - low
        wgt = jnp.where(valid & (~oob), 1.0, 0.0)                    # (P, G)
        idx = jnp.arange(size, dtype=jnp.float32)[None, None, :]     # (1, 1, size)
        contrib = wgt[..., None] * (
            (1.0 - frac)[..., None] * (idx == low[..., None]).astype(jnp.float32)
            + frac[..., None] * (idx == high[..., None]).astype(jnp.float32))
        return contrib.sum(axis=1) / grid_n                          # (P, size)

    def one(roi):
        x1, y1, x2, y2 = roi[0], roi[1], roi[2], roi[3]
        roi_w = jnp.maximum(x2 - x1, 1.0)
        roi_h = jnp.maximum(y2 - y1, 1.0)
        if sampling_ratio > 0:
            gh = jnp.float32(sampling_ratio)
            gw = jnp.float32(sampling_ratio)
        else:  # adaptive: ceil(roi_extent / P), always <= MAX_GRID for this config
            gh = jnp.maximum(jnp.ceil(roi_h / P), 1.0)
            gw = jnp.maximum(jnp.ceil(roi_w / P), 1.0)
        Ay = axis_weights(y1, roi_h, gh, H)                          # (P, H)
        Ax = axis_weights(x1, roi_w, gw, W)                          # (P, W)
        # out[y*W + x, py*P + px] = Ay[py, y] * Ax[px, x]   (transposed layout)
        m = Ay.T[:, None, :, None] * Ax.T[None, :, None, :]          # (H, W, P, P)
        return m.reshape(H * W, P * P)

    return jax.vmap(one)(rois_xyxy.astype(jnp.float32))


# ---------------- parameters (deterministic, synthetic; BN folded at init) -----
def _fold_bn_t(w_t, gamma, beta, mean, var, eps=BN_EPS):
    """Fold eval-mode BatchNorm into the TRANSPOSED (Cout, Cin) 1x1-conv weight."""
    scale = gamma / jnp.sqrt(var + eps)
    return w_t * scale[:, None], (beta - mean * scale).reshape(-1, 1)


def init_params(key):
    ks = jax.random.split(key, 12)
    p = {}
    # stand-in backbone: 1x1 conv (IMG_C -> C_BB) + BN + ReLU, transposed weight
    w = 0.1 * jax.random.normal(ks[0], (C_BB, IMG_C), jnp.float32)
    g = 1.0 + 0.1 * jax.random.normal(ks[1], (C_BB,), jnp.float32)
    bta = 0.1 * jax.random.normal(ks[2], (C_BB,), jnp.float32)
    mu = 0.1 * jax.random.normal(ks[3], (C_BB,), jnp.float32)
    var = 1.0 + 0.1 * jnp.abs(jax.random.normal(ks[4], (C_BB,), jnp.float32))
    p["w_bb"], p["b_bb"] = _fold_bn_t(w, g, bta, mu, var)
    # custom layer: Conv2d(C_BB, C_CUSTOM, 1x1, bias=False) + BatchNorm2d + ReLU
    w = 0.05 * jax.random.normal(ks[5], (C_CUSTOM, C_BB), jnp.float32)
    g = 1.0 + 0.1 * jax.random.normal(ks[6], (C_CUSTOM,), jnp.float32)
    bta = 0.1 * jax.random.normal(ks[7], (C_CUSTOM,), jnp.float32)
    mu = 0.1 * jax.random.normal(ks[8], (C_CUSTOM,), jnp.float32)
    var = 1.0 + 0.1 * jnp.abs(jax.random.normal(ks[9], (C_CUSTOM,), jnp.float32))
    p["w_custom"], p["b_custom"] = _fold_bn_t(w, g, bta, mu, var)
    # classifier Linear(C_CUSTOM*P*P -> NUM_CLASSES).  PyTorch flattens the ROI
    # features as (N, C, P, P) -> (C*P*P); permute ONCE here to the kernel's
    # dense 2D (K*P2, C) layout (no runtime transpose, no per-class sub-tiles).
    feat = C_CUSTOM * P2
    w_cls = 0.02 * jax.random.normal(ks[10], (NUM_CLASSES, feat), jnp.float32)
    p["w_cls"] = (w_cls.reshape(NUM_CLASSES, C_CUSTOM, P2)
                       .transpose(0, 2, 1)
                       .reshape(NUM_CLASSES * P2, C_CUSTOM))
    b_cls = 0.01 * jax.random.normal(ks[11], (NUM_CLASSES,), jnp.float32)
    p["b_cls"] = jnp.zeros((1, OUT_PAD), jnp.float32).at[0, :NUM_CLASSES].set(b_cls)
    # constant selector matrices for the in-kernel diagonal extraction:
    #   m_diag[k*P2 + p, p'] = (p == p')          (eye tiled over classes)
    #   g_sel [k*P2 + p, k'] = (k == k')          (class one-hot, padded to 128)
    p["m_diag"] = jnp.tile(jnp.eye(P2, dtype=jnp.float32), (NUM_CLASSES, 1))
    p["g_sel"] = jnp.pad(
        jnp.repeat(jnp.eye(NUM_CLASSES, dtype=jnp.float32), P2, axis=0),
        ((0, 0), (0, OUT_PAD - NUM_CLASSES)))
    return p


# ---------------- forward pass (mirrors M_ROI_CLASSIFIER.forward) --------------
def roi_classifier_forward(image_nchw, roi_bbox, params):
    Bb, Cin, H, W = image_nchw.shape
    # Keep NCHW: (B, C, H, W) -> (B, C, H*W) is a free reshape; H*W maps to TPU
    # lanes and channels to sublanes inside the kernel (no relayout, no extra
    # HBM round-trip of the image).
    x = image_nchw.reshape(Bb, Cin, H * W).astype(jnp.float32)

    # Stand-in backbone keeps the spatial size, so the feature map is H x W.
    feat_h = H
    n_rois = roi_bbox.shape[0]        # == batch size; ROI i belongs to image i
    # Matches the reference: roi_bbox * extracted_features.shape[2].
    # NOTE: all 4 coords are scaled by the feature HEIGHT (exact here: H == W).
    rois = roi_bbox.astype(jnp.float32) * feat_h

    # Per-ROI bilinear interpolation weights, built already transposed as
    # (N, H*W, P*P) so the in-kernel pooling matmul needs no transpose.
    # TODO(synk): at realistic feature-map sizes, move this in-kernel (scalar-
    #             prefetched boxes + iota arithmetic) and use the separable form.
    wroi_t = build_roi_interp_weights_t(rois, feat_h, feat_h)   # (N, H*W, P*P)

    hw = H * W
    out = pl.pallas_call(
        _fused_forward_kernel,
        out_shape=jax.ShapeDtypeStruct((n_rois, OUT_PAD), jnp.float32),
        grid_spec=pltpu.PrefetchScalarGridSpec(
            num_scalar_prefetch=0,
            # n_rois == 2: one grid step amortizes the fixed per-step overhead;
            # a per-ROI "parallel" grid only pays off for much larger n_rois.
            grid=(1,),
            in_specs=[
                pl.BlockSpec((n_rois, Cin, hw), lambda i: (0, 0, 0)),          # images
                pl.BlockSpec((C_BB, Cin), lambda i: (0, 0)),                   # folded conv1^T
                pl.BlockSpec((C_BB, 1), lambda i: (0, 0)),
                pl.BlockSpec((C_CUSTOM, C_BB), lambda i: (0, 0)),              # folded conv2^T
                pl.BlockSpec((C_CUSTOM, 1), lambda i: (0, 0)),
                pl.BlockSpec((n_rois, hw, P2), lambda i: (0, 0, 0)),           # ROI weights^T
                pl.BlockSpec((NUM_CLASSES * P2, C_CUSTOM), lambda i: (0, 0)),  # classifier W
                pl.BlockSpec((NUM_CLASSES * P2, P2), lambda i: (0, 0)),        # diag mask
                pl.BlockSpec((NUM_CLASSES * P2, OUT_PAD), lambda i: (0, 0)),   # group selector
                pl.BlockSpec((1, OUT_PAD), lambda i: (0, 0)),                  # padded bias
            ],
            out_specs=pl.BlockSpec((n_rois, OUT_PAD), lambda i: (0, 0)),
        ),
        compiler_params=pltpu.CompilerParams(
            dimension_semantics=("arbitrary",),
        ),
    )(x, params["w_bb"], params["b_bb"], params["w_custom"], params["b_custom"],
      wroi_t, params["w_cls"], params["m_diag"], params["g_sel"], params["b_cls"])
    # Lane-dense (B, 128) kernel output; slice back to the real class count.
    return out[:, :NUM_CLASSES]


# ---------------- main ----------------------------------------------------------
if __name__ == "__main__":
    key = jax.random.PRNGKey(0)
    k_img, k_box, k_par = jax.random.split(key, 3)

    image = jax.random.normal(k_img, (B, IMG_C, IMG_H, IMG_W), jnp.float32)
    # normalized boxes (x1, y1, x2, y2) in [0, 1] with x1 < x2, y1 < y2
    pts = jax.random.uniform(k_box, (B, 2, 2), jnp.float32)
    xy1 = jnp.min(pts, axis=1)
    xy2 = jnp.max(pts, axis=1)
    roi_bbox = jnp.concatenate([xy1, xy2], axis=1)            # (B, 4)

    params = init_params(k_par)

    fwd = jax.jit(roi_classifier_forward)
    logits = jax.block_until_ready(fwd(image, roi_bbox, params))
    assert logits.shape == (B, NUM_CLASSES), logits.shape
    assert bool(jnp.all(jnp.isfinite(logits)))
    print("KERNEL_OK")
</pallas_src>

<mosaic_0001>
module attributes {stable_mosaic.version = 11 : i64} {
  func.func @_fused_forward_kernel(%arg0: i32, %arg1: memref<2x4x256xf32, #tpu.memory_space<vmem>>, %arg2: memref<64x4xf32, #tpu.memory_space<vmem>>, %arg3: memref<64x1xf32, #tpu.memory_space<vmem>>, %arg4: memref<32x64xf32, #tpu.memory_space<vmem>>, %arg5: memref<32x1xf32, #tpu.memory_space<vmem>>, %arg6: memref<2x256x25xf32, #tpu.memory_space<vmem>>, %arg7: memref<250x32xf32, #tpu.memory_space<vmem>>, %arg8: memref<250x25xf32, #tpu.memory_space<vmem>>, %arg9: memref<250x128xf32, #tpu.memory_space<vmem>>, %arg10: memref<1x128xf32, #tpu.memory_space<vmem>>, %arg11: memref<2x128xf32, #tpu.memory_space<vmem>>) attributes {dimension_semantics = [#tpu.dimension_semantics<arbitrary>], iteration_bounds = array<i64: 1>, scalar_prefetch = 0 : i64, scratch_operands = 0 : i64, tpu.core_type = #tpu.core_type<tc>, window_params = [{pipeline_mode = #tpu.pipeline_mode<synchronous>, transform_indices = @transform_0, window_bounds = array<i64: 2, 4, 256>}, {pipeline_mode = #tpu.pipeline_mode<synchronous>, transform_indices = @transform_1, window_bounds = array<i64: 64, 4>}, {pipeline_mode = #tpu.pipeline_mode<synchronous>, transform_indices = @transform_2, window_bounds = array<i64: 64, 1>}, {pipeline_mode = #tpu.pipeline_mode<synchronous>, transform_indices = @transform_3, window_bounds = array<i64: 32, 64>}, {pipeline_mode = #tpu.pipeline_mode<synchronous>, transform_indices = @transform_4, window_bounds = array<i64: 32, 1>}, {pipeline_mode = #tpu.pipeline_mode<synchronous>, transform_indices = @transform_5, window_bounds = array<i64: 2, 256, 25>}, {pipeline_mode = #tpu.pipeline_mode<synchronous>, transform_indices = @transform_6, window_bounds = array<i64: 250, 32>}, {pipeline_mode = #tpu.pipeline_mode<synchronous>, transform_indices = @transform_7, window_bounds = array<i64: 250, 25>}, {pipeline_mode = #tpu.pipeline_mode<synchronous>, transform_indices = @transform_8, window_bounds = array<i64: 250, 128>}, {pipeline_mode = #tpu.pipeline_mode<synchronous>, transform_indices = @transform_9, window_bounds = array<i64: 1, 128>}, {pipeline_mode = #tpu.pipeline_mode<synchronous>, transform_indices = @transform_10, window_bounds = array<i64: 2, 128>}]} {
    %c0 = arith.constant 0 : index
    %c0_0 = arith.constant 0 : index
    %c0_1 = arith.constant 0 : index
    %0 = vector.load %arg1[%c0, %c0_0, %c0_1] : memref<2x4x256xf32, #tpu.memory_space<vmem>>, vector<1x4x256xf32>
    %1 = vector.shape_cast %0 : vector<1x4x256xf32> to vector<4x256xf32>
    %c1 = arith.constant 1 : index
    %c0_2 = arith.constant 0 : index
    %c0_3 = arith.constant 0 : index
    %2 = vector.load %arg1[%c1, %c0_2, %c0_3] : memref<2x4x256xf32, #tpu.memory_space<vmem>>, vector<1x4x256xf32>
    %3 = vector.shape_cast %2 : vector<1x4x256xf32> to vector<4x256xf32>
    %4 = tpu.concatenate %1, %3 in 1 : vector<4x256xf32>, vector<4x256xf32> -> vector<4x512xf32>
    %c0_4 = arith.constant 0 : index
    %c0_5 = arith.constant 0 : index
    %5 = vector.load %arg2[%c0_4, %c0_5] : memref<64x4xf32, #tpu.memory_space<vmem>>, vector<64x4xf32>
    %cst = arith.constant dense<0.000000e+00> : vector<64x512xf32>
    %6 = tpu.matmul %5, %4, %cst {dimension_numbers = #tpu.dot_dimension_numbers<[1], [0], [0], [1], [0, 0, 1, 1], [], []>} : vector<64x4xf32>, vector<4x512xf32>, vector<64x512xf32> -> vector<64x512xf32>
    %c0_6 = arith.constant 0 : index
    %c0_7 = arith.constant 0 : index
    %7 = vector.load %arg3[%c0_6, %c0_7] : memref<64x1xf32, #tpu.memory_space<vmem>>, vector<64x1xf32>
    %8 = vector.broadcast %7 : vector<64x1xf32> to vector<64x512xf32>
    %9 = arith.addf %6, %8 : vector<64x512xf32>
    %cst_8 = arith.constant 0.000000e+00 : f32
    %10 = vector.broadcast %cst_8 : f32 to vector<64x512xf32>
    %11 = arith.maximumf %9, %10 : vector<64x512xf32>
    %c0_9 = arith.constant 0 : index
    %c0_10 = arith.constant 0 : index
    %12 = vector.load %arg4[%c0_9, %c0_10] : memref<32x64xf32, #tpu.memory_space<vmem>>, vector<32x64xf32>
    %cst_11 = arith.constant dense<0.000000e+00> : vector<32x512xf32>
    %13 = tpu.matmul %12, %11, %cst_11 {dimension_numbers = #tpu.dot_dimension_numbers<[1], [0], [0], [1], [0, 0, 1, 1], [], []>} : vector<32x64xf32>, vector<64x512xf32>, vector<32x512xf32> -> vector<32x512xf32>
    %c0_12 = arith.constant 0 : index
    %c0_13 = arith.constant 0 : index
    %14 = vector.load %arg5[%c0_12, %c0_13] : memref<32x1xf32, #tpu.memory_space<vmem>>, vector<32x1xf32>
    %15 = vector.broadcast %14 : vector<32x1xf32> to vector<32x512xf32>
    %16 = arith.addf %13, %15 : vector<32x512xf32>
    %cst_14 = arith.constant 0.000000e+00 : f32
    %17 = vector.broadcast %cst_14 : f32 to vector<32x512xf32>
    %18 = arith.maximumf %16, %17 : vector<32x512xf32>
    %c0_15 = arith.constant 0 : index
    %c0_16 = arith.constant 0 : index
    %19 = vector.load %arg7[%c0_15, %c0_16] : memref<250x32xf32, #tpu.memory_space<vmem>>, vector<250x32xf32>
    %c0_17 = arith.constant 0 : index
    %c0_18 = arith.constant 0 : index
    %20 = vector.load %arg8[%c0_17, %c0_18] : memref<250x25xf32, #tpu.memory_space<vmem>>, vector<250x25xf32>
    %c0_19 = arith.constant 0 : index
    %c0_20 = arith.constant 0 : index
    %21 = vector.load %arg9[%c0_19, %c0_20] : memref<250x128xf32, #tpu.memory_space<vmem>>, vector<250x128xf32>
    %22 = vector.extract_strided_slice %18 {offsets = [0, 0], sizes = [32, 256], strides = [1, 1]} : vector<32x512xf32> to vector<32x256xf32>
    %c0_21 = arith.constant 0 : index
    %c0_22 = arith.constant 0 : index
    %c0_23 = arith.constant 0 : index
    %23 = vector.load %arg6[%c0_21, %c0_22, %c0_23] : memref<2x256x25xf32, #tpu.memory_space<vmem>>, vector<1x256x25xf32>
    %24 = vector.shape_cast %23 : vector<1x256x25xf32> to vector<256x25xf32>
    %cst_24 = arith.constant dense<0.000000e+00> : vector<32x25xf32>
    %25 = tpu.matmul %22, %24, %cst_24 {dimension_numbers = #tpu.dot_dimension_numbers<[1], [0], [0], [1], [0, 0, 1, 1], [], []>} : vector<32x256xf32>, vector<256x25xf32>, vector<32x25xf32> -> vector<32x25xf32>
    %cst_25 = arith.constant dense<0.000000e+00> : vector<250x25xf32>
    %26 = tpu.matmul %19, %25, %cst_25 {dimension_numbers = #tpu.dot_dimension_numbers<[1], [0], [0], [1], [0, 0, 1, 1], [], []>} : vector<250x32xf32>, vector<32x25xf32>, vector<250x25xf32> -> vector<250x25xf32>
    %27 = arith.mulf %26, %20 : vector<250x25xf32>
    %cst_26 = arith.constant dense<0.000000e+00> : vector<250xf32>
    %28 = vector.multi_reduction <add>, %27, %cst_26 [1] : vector<250x25xf32> to vector<250xf32>
    %29 = vector.shape_cast %28 : vector<250xf32> to vector<250x1xf32>
    %30 = vector.broadcast %29 : vector<250x1xf32> to vector<250x128xf32>
    %31 = arith.mulf %30, %21 : vector<250x128xf32>
    %cst_27 = arith.constant dense<0.000000e+00> : vector<128xf32>
    %32 = vector.multi_reduction <add>, %31, %cst_27 [0] : vector<250x128xf32> to vector<128xf32>
    %33 = vector.shape_cast %32 : vector<128xf32> to vector<1x128xf32>
    %34 = vector.extract_strided_slice %18 {offsets = [0, 256], sizes = [32, 256], strides = [1, 1]} : vector<32x512xf32> to vector<32x256xf32>
    %c1_28 = arith.constant 1 : index
    %c0_29 = arith.constant 0 : index
    %c0_30 = arith.constant 0 : index
    %35 = vector.load %arg6[%c1_28, %c0_29, %c0_30] : memref<2x256x25xf32, #tpu.memory_space<vmem>>, vector<1x256x25xf32>
    %36 = vector.shape_cast %35 : vector<1x256x25xf32> to vector<256x25xf32>
    %cst_31 = arith.constant dense<0.000000e+00> : vector<32x25xf32>
    %37 = tpu.matmul %34, %36, %cst_31 {dimension_numbers = #tpu.dot_dimension_numbers<[1], [0], [0], [1], [0, 0, 1, 1], [], []>} : vector<32x256xf32>, vector<256x25xf32>, vector<32x25xf32> -> vector<32x25xf32>
    %cst_32 = arith.constant dense<0.000000e+00> : vector<250x25xf32>
    %38 = tpu.matmul %19, %37, %cst_32 {dimension_numbers = #tpu.dot_dimension_numbers<[1], [0], [0], [1], [0, 0, 1, 1], [], []>} : vector<250x32xf32>, vector<32x25xf32>, vector<250x25xf32> -> vector<250x25xf32>
    %39 = arith.mulf %38, %20 : vector<250x25xf32>
    %cst_33 = arith.constant dense<0.000000e+00> : vector<250xf32>
    %40 = vector.multi_reduction <add>, %39, %cst_33 [1] : vector<250x25xf32> to vector<250xf32>
    %41 = vector.shape_cast %40 : vector<250xf32> to vector<250x1xf32>
    %42 = vector.broadcast %41 : vector<250x1xf32> to vector<250x128xf32>
    %43 = arith.mulf %42, %21 : vector<250x128xf32>
    %cst_34 = arith.constant dense<0.000000e+00> : vector<128xf32>
    %44 = vector.multi_reduction <add>, %43, %cst_34 [0] : vector<250x128xf32> to vector<128xf32>
    %45 = vector.shape_cast %44 : vector<128xf32> to vector<1x128xf32>
    %46 = tpu.concatenate %33, %45 in 0 : vector<1x128xf32>, vector<1x128xf32> -> vector<2x128xf32>
    %c0_35 = arith.constant 0 : index
    %c0_36 = arith.constant 0 : index
    %47 = vector.load %arg10[%c0_35, %c0_36] : memref<1x128xf32, #tpu.memory_space<vmem>>, vector<1x128xf32>
    %48 = vector.broadcast %47 : vector<1x128xf32> to vector<2x128xf32>
    %49 = arith.addf %46, %48 : vector<2x128xf32>
    %c0_37 = arith.constant 0 : index
    %c0_38 = arith.constant 0 : index
    %50 = vector.load %arg11[%c0_37, %c0_38] : memref<2x128xf32, #tpu.memory_space<vmem>>, vector<2x128xf32>
    tpu.vector_store %arg11[%c0_37, %c0_38], %49 {strides = array<i32>} : memref<2x128xf32, #tpu.memory_space<vmem>>, vector<2x128xf32>,
    return
  }
  func.func @transform_0(%arg0: i32) -> (i32, i32, i32) {
    %c0_i32 = arith.constant 0 : i32
    %c0_i32_0 = arith.constant 0 : i32
    %c0_i32_1 = arith.constant 0 : i32
    %c0_i32_2 = arith.constant 0 : i32
    return %c0_i32, %c0_i32_0, %c0_i32_1 : i32, i32, i32
  }
  func.func @transform_1(%arg0: i32) -> (i32, i32) {
    %c0_i32 = arith.constant 0 : i32
    %c0_i32_0 = arith.constant 0 : i32
    %c0_i32_1 = arith.constant 0 : i32
    return %c0_i32, %c0_i32_0 : i32, i32
  }
  func.func @transform_2(%arg0: i32) -> (i32, i32) {
    %c0_i32 = arith.constant 0 : i32
    %c0_i32_0 = arith.constant 0 : i32
    %c0_i32_1 = arith.constant 0 : i32
    return %c0_i32, %c0_i32_0 : i32, i32
  }
  func.func @transform_3(%arg0: i32) -> (i32, i32) {
    %c0_i32 = arith.constant 0 : i32
    %c0_i32_0 = arith.constant 0 : i32
    %c0_i32_1 = arith.constant 0 : i32
    return %c0_i32, %c0_i32_0 : i32, i32
  }
  func.func @transform_4(%arg0: i32) -> (i32, i32) {
    %c0_i32 = arith.constant 0 : i32
    %c0_i32_0 = arith.constant 0 : i32
    %c0_i32_1 = arith.constant 0 : i32
    return %c0_i32, %c0_i32_0 : i32, i32
  }
  func.func @transform_5(%arg0: i32) -> (i32, i32, i32) {
    %c0_i32 = arith.constant 0 : i32
    %c0_i32_0 = arith.constant 0 : i32
    %c0_i32_1 = arith.constant 0 : i32
    %c0_i32_2 = arith.constant 0 : i32
    return %c0_i32, %c0_i32_0, %c0_i32_1 : i32, i32, i32
  }
  func.func @transform_6(%arg0: i32) -> (i32, i32) {
    %c0_i32 = arith.constant 0 : i32
    %c0_i32_0 = arith.constant 0 : i32
    %c0_i32_1 = arith.constant 0 : i32
    return %c0_i32, %c0_i32_0 : i32, i32
  }
  func.func @transform_7(%arg0: i32) -> (i32, i32) {
    %c0_i32 = arith.constant 0 : i32
    %c0_i32_0 = arith.constant 0 : i32
    %c0_i32_1 = arith.constant 0 : i32
    return %c0_i32, %c0_i32_0 : i32, i32
  }
  func.func @transform_8(%arg0: i32) -> (i32, i32) {
    %c0_i32 = arith.constant 0 : i32
    %c0_i32_0 = arith.constant 0 : i32
    %c0_i32_1 = arith.constant 0 : i32
    return %c0_i32, %c0_i32_0 : i32, i32
  }
  func.func @transform_9(%arg0: i32) -> (i32, i32) {
    %c0_i32 = arith.constant 0 : i32
    %c0_i32_0 = arith.constant 0 : i32
    %c0_i32_1 = arith.constant 0 : i32
    return %c0_i32, %c0_i32_0 : i32, i32
  }
  func.func @transform_10(%arg0: i32) -> (i32, i32) {
    %c0_i32 = arith.constant 0 : i32
    %c0_i32_0 = arith.constant 0 : i32
    %c0_i32_1 = arith.constant 0 : i32
    return %c0_i32, %c0_i32_0 : i32, i32
  }
}

</mosaic_0001>

<llo_original>
// kernel: roi_classifier_forward.1
$region0: #{roi_classifier_forward.1}
  #allocation0 [shape = 'u32[]', space=smem, size = 0x4, offset = 0x4, fixed_abs, tag = 'smem constant byte address 0x4 - core index']
  #allocation1 [shape = 'u32[144,128]{1,0:T(1,128)}', space=vmem, size = 0x12000, scoped, tag = 'internal scratch']
  %s0 = inlined_call_operand.vmem [shape: f32[2,4,256], index: 0, kind: input, shape index: {}]
  %s1 = inlined_call_operand.vmem [shape: f32[64,4], index: 1, kind: input, shape index: {}]
  %s2 = inlined_call_operand.vmem [shape: f32[64,1], index: 2, kind: input, shape index: {}]
  %s3 = inlined_call_operand.vmem [shape: f32[32,64], index: 3, kind: input, shape index: {}]
  %s4 = inlined_call_operand.vmem [shape: f32[32,1], index: 4, kind: input, shape index: {}]
  %s5 = inlined_call_operand.vmem [shape: f32[2,256,25], index: 5, kind: input, shape index: {}]
  %s6 = inlined_call_operand.vmem [shape: f32[250,32], index: 6, kind: input, shape index: {}]
  %s7 = inlined_call_operand.vmem [shape: f32[250,25], index: 7, kind: input, shape index: {}]
  %s8 = inlined_call_operand.vmem [shape: f32[250,128], index: 8, kind: input, shape index: {}]
  %s9 = inlined_call_operand.vmem [shape: f32[1,128], index: 9, kind: input, shape index: {}]
  %s10 = inlined_call_operand.hbm [shape: f32[2,128], index: 10, kind: output, shape index: {}]
  %s11 = sld [smem:[#allocation0]]
  $region50: #{roi_classifier_forward.1} parent=0
    _
  %s13 = ssub.s32 1, %s11
  %s14 = scalar_select 0, %s13, %s11
  $region1: #{roi_classifier_forward.1} parent=0
    #allocation2 [shape = 'u8[1024]{0}', space=vmem, size = 0x400, scoped, tag = 'output window, operand 0, single buffered']
    #allocation3 [shape = 's32[1]{0}', space=sflag, size = 0x4, scoped, tag = 'scoped memory for roi_classifier_forward.1']
    %15 = vsyncpa [#allocation3], 0
    // Predicated region
    $region2: #{roi_classifier_forward.1} parent=1 // pred_check
      _
    $region3: #{roi_classifier_forward.1} parent=1 // pred_check_branch
      %17 = sbr.rel (0) target = $region5
    $region4: #{roi_classifier_forward.1} parent=1 // pred_region
      _
    $region5: #{roi_classifier_forward.1} parent=1 // pred_fallthru
      _
    // Predicated region
    $region6: #{roi_classifier_forward.1} parent=1 // pred_check
      _
    $region7: #{roi_classifier_forward.1} parent=1 // pred_check_branch
      %19 = sbr.rel (0) target = $region9
    $region8: #{roi_classifier_forward.1} parent=1 // pred_region
      _
    $region9: #{roi_classifier_forward.1} parent=1 // pred_fallthru
      _
    // Predicated region
    $region10: #{roi_classifier_forward.1} parent=1 // pred_check
      _
    $region11: #{roi_classifier_forward.1} parent=1 // pred_check_branch
      %21 = sbr.rel (0) target = $region13
    $region12: #{roi_classifier_forward.1} parent=1 // pred_region
      _
    $region13: #{roi_classifier_forward.1} parent=1 // pred_fallthru
      _
    // Predicated region
    $region14: #{roi_classifier_forward.1} parent=1 // pred_check
      _
    $region15: #{roi_classifier_forward.1} parent=1 // pred_check_branch
      %23 = sbr.rel (0) target = $region17
    $region16: #{roi_classifier_forward.1} parent=1 // pred_region
      _
    $region17: #{roi_classifier_forward.1} parent=1 // pred_fallthru
      _
    // Predicated region
    $region18: #{roi_classifier_forward.1} parent=1 // pred_check
      _
    $region19: #{roi_classifier_forward.1} parent=1 // pred_check_branch
      %25 = sbr.rel (0) target = $region21
    $region20: #{roi_classifier_forward.1} parent=1 // pred_region
      _
    $region21: #{roi_classifier_forward.1} parent=1 // pred_fallthru
      _
    // Predicated region
    $region22: #{roi_classifier_forward.1} parent=1 // pred_check
      _
    $region23: #{roi_classifier_forward.1} parent=1 // pred_check_branch
      %27 = sbr.rel (0) target = $region25
    $region24: #{roi_classifier_forward.1} parent=1 // pred_region
      _
    $region25: #{roi_classifier_forward.1} parent=1 // pred_fallthru
      _
    // Predicated region
    $region26: #{roi_classifier_forward.1} parent=1 // pred_check
      _
    $region27: #{roi_classifier_forward.1} parent=1 // pred_check_branch
      %29 = sbr.rel (0) target = $region29
    $region28: #{roi_classifier_forward.1} parent=1 // pred_region
      _
    $region29: #{roi_classifier_forward.1} parent=1 // pred_fallthru
      _
    // Predicated region
    $region30: #{roi_classifier_forward.1} parent=1 // pred_check
      _
    $region31: #{roi_classifier_forward.1} parent=1 // pred_check_branch
      %31 = sbr.rel (0) target = $region33
    $region32: #{roi_classifier_forward.1} parent=1 // pred_region
      _
    $region33: #{roi_classifier_forward.1} parent=1 // pred_fallthru
      _
    // Predicated region
    $region34: #{roi_classifier_forward.1} parent=1 // pred_check
      _
    $region35: #{roi_classifier_forward.1} parent=1 // pred_check_branch
      %33 = sbr.rel (0) target = $region37
    $region36: #{roi_classifier_forward.1} parent=1 // pred_region
      _
    $region37: #{roi_classifier_forward.1} parent=1 // pred_fallthru
      _
    // Predicated region
    $region38: #{roi_classifier_forward.1} parent=1 // pred_check
      _
    $region39: #{roi_classifier_forward.1} parent=1 // pred_check_branch
      %35 = sbr.rel (0) target = $region41
    $region40: #{roi_classifier_forward.1} parent=1 // pred_region
      _
    $region41: #{roi_classifier_forward.1} parent=1 // pred_fallthru
      _
    %v36 = vld [vmem:[%s0] sm:$0xff]
    %s37 = scalar_lea.vmem %s0, 8
    %v38 = vld [vmem:[%s37] sm:$0xff]
    %v40 = vcombine.high %v36, %v36
    %v42 = vcombine.high %v38, %v38
    %v43 = vld [vmem:[%s1] sm:$0xff]
    %v44 = vld [vmem:[%s1 + $0x8] sm:$0xff]
    %v45 = vld [vmem:[%s1 + $0x10] sm:$0xff]
    %v46 = vld [vmem:[%s1 + $0x18] sm:$0xff]
    %v47 = vld [vmem:[%s1 + $0x20] sm:$0xff]
    %v48 = vld [vmem:[%s1 + $0x28] sm:$0xff]
    %v49 = vld [vmem:[%s1 + $0x30] sm:$0xff]
    %v50 = vld [vmem:[%s1 + $0x38] sm:$0xff]
    %v51 = vld [vmem:[%s2] sm:$0xff]
    %v52 = vld [vmem:[%s2 + $0x8] sm:$0xff]
    %v53 = vld [vmem:[%s2 + $0x10] sm:$0xff]
    %v54 = vld [vmem:[%s2 + $0x18] sm:$0xff]
    %v55 = vld [vmem:[%s2 + $0x20] sm:$0xff]
    %v56 = vld [vmem:[%s2 + $0x28] sm:$0xff]
    %v57 = vld [vmem:[%s2 + $0x30] sm:$0xff]
    %v58 = vld [vmem:[%s2 + $0x38] sm:$0xff]
    %60 = vset.pattern.permute.xlu0 0
    %61 = vperm.xlu0 %60, %v51
    %v62 = vpop.permute.xlu0 %61
    %65 = vset.pattern.permute.xlu0 0
    %66 = vperm.xlu0 %65, %v52
    %v67 = vpop.permute.xlu0 %66
    %70 = vset.pattern.permute.xlu0 0
    %71 = vperm.xlu0 %70, %v53
    %v72 = vpop.permute.xlu0 %71
    %75 = vset.pattern.permute.xlu0 0
    %76 = vperm.xlu0 %75, %v54
    %v77 = vpop.permute.xlu0 %76
    %80 = vset.pattern.permute.xlu0 0
    %81 = vperm.xlu0 %80, %v55
    %v82 = vpop.permute.xlu0 %81
    %85 = vset.pattern.permute.xlu0 0
    %86 = vperm.xlu0 %85, %v56
    %v87 = vpop.permute.xlu0 %86
    %90 = vset.pattern.permute.xlu0 0
    %91 = vperm.xlu0 %90, %v57
    %v92 = vpop.permute.xlu0 %91
    %95 = vset.pattern.permute.xlu0 0
    %96 = vperm.xlu0 %95, %v58
    %v97 = vpop.permute.xlu0 %96
    %vm99 = vcmask 31744
    %v101 = vsel %vm99, %v43, 0
    %v104 = vsel %vm99, %v44, 0
    %v107 = vsel %vm99, %v45, 0
    %v110 = vsel %vm99, %v46, 0
    %v113 = vsel %vm99, %v47, 0
    %v116 = vsel %vm99, %v48, 0
    %v119 = vsel %vm99, %v49, 0
    %v122 = vsel %vm99, %v50, 0
    %vm124 = vcmask 1043456
    %v125 = vsel %vm124, %v36, 0
    %v127 = vsel %vm124, %v40, 0
    %v129 = vsel %vm124, %v38, 0
    %v131 = vsel %vm124, %v42, 0
    %133 = vmatprep.subr.mxu0 %v127
    %134 = vmatpush1.msra.mxu0 %v125
    %135 = vmatprep.subr.mxu0 0.0
    %136 = vmatpush1.msra.mxu0 0.0
    %137 = vmatprep.subr.mxu0 0.0
    %138 = vmatpush1.msra.mxu0 0.0
    %139 = vmatprep.subr.mxu0 0.0
    %140 = vmatpush1.msra.mxu0 0.0
    %141 = vmatprep.subr.mxu0 0.0
    %142 = vmatpush1.msra.mxu0 0.0
    %143 = vmatprep.subr.mxu0 0.0
    %144 = vmatpush1.msra.mxu0 0.0
    %145 = vmatprep.subr.mxu0 0.0
    %146 = vmatpush1.msra.mxu0 0.0
    %147 = vmatprep.subr.mxu0 0.0
    %148 = vmatpush1.msra.mxu0 0.0
    %149 = vmatprep.subr.mxu0 0.0
    %150 = vmatpush1.msra.mxu0 0.0
    %151 = vmatprep.subr.mxu0 0.0
    %152 = vmatpush1.msra.mxu0 0.0
    %153 = vmatprep.subr.mxu0 0.0
    %154 = vmatpush1.msra.mxu0 0.0
    %155 = vmatprep.subr.mxu0 0.0
    %156 = vmatpush1.msra.mxu0 0.0
    %157 = vmatprep.subr.mxu0 0.0
    %158 = vmatpush1.msra.mxu0 0.0
    %159 = vmatprep.subr.mxu0 0.0
    %160 = vmatpush1.msra.mxu0 0.0
    %161 = vmatprep.subr.mxu0 0.0
    %162 = vmatpush1.msra.mxu0 0.0
    %163 = vmatprep.subr.mxu0 0.0
    %164 = vmatpush1.msra.mxu0 0.0
    %165 = vmatprep.subr.mxu0 0.0
    %166 = vmatpush1.msra.mxu0 0.0
    %167 = vmatprep.subr.mxu0 0.0
    %168 = vmatpush1.msra.mxu0 0.0
    %169 = vmatprep.subr.mxu0 0.0
    %170 = vmatpush1.msra.mxu0 0.0
    %171 = vmatprep.subr.mxu0 0.0
    %172 = vmatpush1.msra.mxu0 0.0
    %173 = vmatprep.subr.mxu0 0.0
    %174 = vmatpush1.msra.mxu0 0.0
    %175 = vmatprep.subr.mxu0 0.0
    %176 = vmatpush1.msra.mxu0 0.0
    %177 = vmatprep.subr.mxu0 0.0
    %178 = vmatpush1.msra.mxu0 0.0
    %179 = vmatprep.subr.mxu0 0.0
    %180 = vmatpush1.msra.mxu0 0.0
    %181 = vmatprep.subr.mxu0 0.0
    %182 = vmatpush1.msra.mxu0 0.0
    %183 = vmatprep.subr.mxu0 0.0
    %184 = vmatpush1.msra.mxu0 0.0
    %185 = vmatprep.subr.mxu0 0.0
    %186 = vmatpush1.msra.mxu0 0.0
    %187 = vmatprep.subr.mxu0 0.0
    %188 = vmatpush1.msra.mxu0 0.0
    %189 = vmatprep.subr.mxu0 0.0
    %190 = vmatpush1.msra.mxu0 0.0
    %191 = vmatprep.subr.mxu0 0.0
    %192 = vmatpush1.msra.mxu0 0.0
    %193 = vmatprep.subr.mxu0 0.0
    %194 = vmatpush1.msra.mxu0 0.0
    %195 = vmatprep.subr.mxu0 0.0
    %196 = vmatpush1.msra.mxu0 0.0
    %197 = vmatprep.mubr.f32.mxu0 0.0
    %198 = vmatmul.mubr.f32.gmra.mrb[0].mxu0 %v101
    %v199 = vpop.f32.mrb[0].mxu0
    %v200 = vadd.f32 %v62, %v199
    %v201 = vpop.f32.mrb[0].mxu0
    %v202 = vadd.f32 %v62, %v201
    %203 = vmatprep.mubr.f32.mxu0 0.0
    %204 = vmatmul.mubr.f32.gmra.mrb[0].mxu0 %v104
    %v205 = vpop.f32.mrb[0].mxu0
    %v206 = vadd.f32 %v67, %v205
    %v207 = vpop.f32.mrb[0].mxu0
    %v208 = vadd.f32 %v67, %v207
    %209 = vmatprep.mubr.f32.mxu0 0.0
    %210 = vmatmul.mubr.f32.gmra.mrb[0].mxu0 %v107
    %v211 = vpop.f32.mrb[0].mxu0
    %v212 = vadd.f32 %v72, %v211
    %v213 = vpop.f32.mrb[0].mxu0
    %v214 = vadd.f32 %v72, %v213
    %215 = vmatprep.mubr.f32.mxu0 0.0
    %216 = vmatmul.mubr.f32.gmra.mrb[0].mxu0 %v110
    %v217 = vpop.f32.mrb[0].mxu0
    %v218 = vadd.f32 %v77, %v217
    %v219 = vpop.f32.mrb[0].mxu0
    %v220 = vadd.f32 %v77, %v219
    %221 = vmatprep.mubr.f32.mxu0 0.0
    %222 = vmatmul.mubr.f32.gmra.mrb[0].mxu0 %v113
    %v223 = vpop.f32.mrb[0].mxu0
    %v224 = vadd.f32 %v82, %v223
    %v225 = vpop.f32.mrb[0].mxu0
    %v226 = vadd.f32 %v82, %v225
    %227 = vmatprep.mubr.f32.mxu0 0.0
    %228 = vmatmul.mubr.f32.gmra.mrb[0].mxu0 %v116
    %v229 = vpop.f32.mrb[0].mxu0
    %v230 = vadd.f32 %v87, %v229
    %v231 = vpop.f32.mrb[0].mxu0
    %v232 = vadd.f32 %v87, %v231
    %233 = vmatprep.mubr.f32.mxu0 0.0
    %234 = vmatmul.mubr.f32.gmra.mrb[0].mxu0 %v119
    %v235 = vpop.f32.mrb[0].mxu0
    %v236 = vadd.f32 %v92, %v235
    %v237 = vpop.f32.mrb[0].mxu0
    %v238 = vadd.f32 %v92, %v237
    %239 = vmatprep.mubr.f32.mxu0 0.0
    %240 = vmatmul.mubr.f32.gmra.mrb[0].mxu0 %v122
    %v241 = vpop.f32.mrb[0].mxu0
    %v242 = vadd.f32 %v97, %v241
    %v243 = vpop.f32.mrb[0].mxu0
    %v244 = vadd.f32 %v97, %v243
    %245 = vdwg.mxu0
    %246 = vmatprep.subr.mxu0 %v131
    %247 = vmatpush1.msra.mxu0 %v129
    %248 = vmatprep.subr.mxu0 0.0
    %249 = vmatpush1.msra.mxu0 0.0
    %250 = vmatprep.subr.mxu0 0.0
    %251 = vmatpush1.msra.mxu0 0.0
    %252 = vmatprep.subr.mxu0 0.0
    %253 = vmatpush1.msra.mxu0 0.0
    %254 = vmatprep.subr.mxu0 0.0
    %255 = vmatpush1.msra.mxu0 0.0
    %256 = vmatprep.subr.mxu0 0.0
    %257 = vmatpush1.msra.mxu0 0.0
    %258 = vmatprep.subr.mxu0 0.0
    %259 = vmatpush1.msra.mxu0 0.0
    %260 = vmatprep.subr.mxu0 0.0
    %261 = vmatpush1.msra.mxu0 0.0
    %262 = vmatprep.subr.mxu0 0.0
    %263 = vmatpush1.msra.mxu0 0.0
    %264 = vmatprep.subr.mxu0 0.0
    %265 = vmatpush1.msra.mxu0 0.0
    %266 = vmatprep.subr.mxu0 0.0
    %267 = vmatpush1.msra.mxu0 0.0
    %268 = vmatprep.subr.mxu0 0.0
    %269 = vmatpush1.msra.mxu0 0.0
    %270 = vmatprep.subr.mxu0 0.0
    %271 = vmatpush1.msra.mxu0 0.0
    %272 = vmatprep.subr.mxu0 0.0
    %273 = vmatpush1.msra.mxu0 0.0
    %274 = vmatprep.subr.mxu0 0.0
    %275 = vmatpush1.msra.mxu0 0.0
    %276 = vmatprep.subr.mxu0 0.0
    %277 = vmatpush1.msra.mxu0 0.0
    %278 = vmatprep.subr.mxu0 0.0
    %279 = vmatpush1.msra.mxu0 0.0
    %280 = vmatprep.subr.mxu0 0.0
    %281 = vmatpush1.msra.mxu0 0.0
    %282 = vmatprep.subr.mxu0 0.0
    %283 = vmatpush1.msra.mxu0 0.0
    %284 = vmatprep.subr.mxu0 0.0
    %285 = vmatpush1.msra.mxu0 0.0
    %286 = vmatprep.subr.mxu0 0.0
    %287 = vmatpush1.msra.mxu0 0.0
    %288 = vmatprep.subr.mxu0 0.0
    %289 = vmatpush1.msra.mxu0 0.0
    %290 = vmatprep.subr.mxu0 0.0
    %291 = vmatpush1.msra.mxu0 0.0
    %292 = vmatprep.subr.mxu0 0.0
    %293 = vmatpush1.msra.mxu0 0.0
    %294 = vmatprep.subr.mxu0 0.0
    %295 = vmatpush1.msra.mxu0 0.0
    %296 = vmatprep.subr.mxu0 0.0
    %297 = vmatpush1.msra.mxu0 0.0
    %298 = vmatprep.subr.mxu0 0.0
    %299 = vmatpush1.msra.mxu0 0.0
    %300 = vmatprep.subr.mxu0 0.0
    %301 = vmatpush1.msra.mxu0 0.0
    %302 = vmatprep.subr.mxu0 0.0
    %303 = vmatpush1.msra.mxu0 0.0
    %304 = vmatprep.subr.mxu0 0.0
    %305 = vmatpush1.msra.mxu0 0.0
    %306 = vmatprep.subr.mxu0 0.0
    %307 = vmatpush1.msra.mxu0 0.0
    %308 = vmatprep.subr.mxu0 0.0
    %309 = vmatpush1.msra.mxu0 0.0
    %310 = vmatprep.mubr.f32.mxu0 0.0
    %311 = vmatmul.mubr.f32.gmra.mrb[0].mxu0 %v101
    %v312 = vpop.f32.mrb[0].mxu0
    %v313 = vadd.f32 %v62, %v312
    %v314 = vpop.f32.mrb[0].mxu0
    %v315 = vadd.f32 %v62, %v314
    %316 = vmatprep.mubr.f32.mxu0 0.0
    %317 = vmatmul.mubr.f32.gmra.mrb[0].mxu0 %v104
    %v318 = vpop.f32.mrb[0].mxu0
    %v319 = vadd.f32 %v67, %v318
    %v320 = vpop.f32.mrb[0].mxu0
    %v321 = vadd.f32 %v67, %v320
    %322 = vmatprep.mubr.f32.mxu0 0.0
    %323 = vmatmul.mubr.f32.gmra.mrb[0].mxu0 %v107
    %v324 = vpop.f32.mrb[0].mxu0
    %v325 = vadd.f32 %v72, %v324
    %v326 = vpop.f32.mrb[0].mxu0
    %v327 = vadd.f32 %v72, %v326
    %328 = vmatprep.mubr.f32.mxu0 0.0
    %329 = vmatmul.mubr.f32.gmra.mrb[0].mxu0 %v110
    %v330 = vpop.f32.mrb[0].mxu0
    %v331 = vadd.f32 %v77, %v330
    %v332 = vpop.f32.mrb[0].mxu0
    %v333 = vadd.f32 %v77, %v332
    %334 = vmatprep.mubr.f32.mxu0 0.0
    %335 = vmatmul.mubr.f32.gmra.mrb[0].mxu0 %v113
    %v336 = vpop.f32.mrb[0].mxu0
    %v337 = vadd.f32 %v82, %v336
    %v338 = vpop.f32.mrb[0].mxu0
    %v339 = vadd.f32 %v82, %v338
    %340 = vmatprep.mubr.f32.mxu0 0.0
    %341 = vmatmul.mubr.f32.gmra.mrb[0].mxu0 %v116
    %v342 = vpop.f32.mrb[0].mxu0
    %v343 = vadd.f32 %v87, %v342
    %v344 = vpop.f32.mrb[0].mxu0
    %v345 = vadd.f32 %v87, %v344
    %346 = vmatprep.mubr.f32.mxu0 0.0
    %347 = vmatmul.mubr.f32.gmra.mrb[0].mxu0 %v119
    %v348 = vpop.f32.mrb[0].mxu0
    %v349 = vadd.f32 %v92, %v348
    %v350 = vpop.f32.mrb[0].mxu0
    %v351 = vadd.f32 %v92, %v350
    %352 = vmatprep.mubr.f32.mxu0 0.0
    %353 = vmatmul.mubr.f32.gmra.mrb[0].mxu0 %v122
    %v354 = vpop.f32.mrb[0].mxu0
    %v355 = vadd.f32 %v97, %v354
    %v356 = vpop.f32.mrb[0].mxu0
    %v357 = vadd.f32 %v97, %v356
    %358 = vdwg.mxu0
    %v359 = vmax.f32 %v200, 0.0
    %v360 = vmax.f32 %v202, 0.0
    %v361 = vmax.f32 %v313, 0.0
    %v362 = vmax.f32 %v315, 0.0
    %v363 = vmax.f32 %v206, 0.0
    %v364 = vmax.f32 %v208, 0.0
    %v365 = vmax.f32 %v319, 0.0
    %v366 = vmax.f32 %v321, 0.0
    %v367 = vmax.f32 %v212, 0.0
    %v368 = vmax.f32 %v214, 0.0
    %v369 = vmax.f32 %v325, 0.0
    %v370 = vmax.f32 %v327, 0.0
    %v371 = vmax.f32 %v218, 0.0
    %v372 = vmax.f32 %v220, 0.0
    %v373 = vmax.f32 %v331, 0.0
    %v374 = vmax.f32 %v333, 0.0
    %v375 = vmax.f32 %v224, 0.0
    %v376 = vmax.f32 %v226, 0.0
    %v377 = vmax.f32 %v337, 0.0
    %v378 = vmax.f32 %v339, 0.0
    %v379 = vmax.f32 %v230, 0.0
    %v380 = vmax.f32 %v232, 0.0
    %v381 = vmax.f32 %v343, 0.0
    %v382 = vmax.f32 %v345, 0.0
    %v383 = vmax.f32 %v236, 0.0
    %v384 = vmax.f32 %v238, 0.0
    %v385 = vmax.f32 %v349, 0.0
    %v386 = vmax.f32 %v351, 0.0
    %v387 = vmax.f32 %v242, 0.0
    %v388 = vmax.f32 %v244, 0.0
    %v389 = vmax.f32 %v355, 0.0
    %v390 = vmax.f32 %v357, 0.0
    %v391 = vld [vmem:[%s3] sm:$0xff]
    %v392 = vld [vmem:[%s3 + $0x8] sm:$0xff]
    %v393 = vld [vmem:[%s3 + $0x10] sm:$0xff]
    %v394 = vld [vmem:[%s3 + $0x18] sm:$0xff]
    %v395 = vld [vmem:[%s4] sm:$0xff]
    %v396 = vld [vmem:[%s4 + $0x8] sm:$0xff]
    %v397 = vld [vmem:[%s4 + $0x10] sm:$0xff]
    %v398 = vld [vmem:[%s4 + $0x18] sm:$0xff]
    %400 = vset.pattern.permute.xlu0 0
    %401 = vperm.xlu0 %400, %v395
    %v402 = vpop.permute.xlu0 %401
    %405 = vset.pattern.permute.xlu0 0
    %406 = vperm.xlu0 %405, %v396
    %v407 = vpop.permute.xlu0 %406
    %410 = vset.pattern.permute.xlu0 0
    %411 = vperm.xlu0 %410, %v397
    %v412 = vpop.permute.xlu0 %411
    %415 = vset.pattern.permute.xlu0 0
    %416 = vperm.xlu0 %415, %v398
    %v417 = vpop.permute.xlu0 %416
    %vm419 = vcmask 523264
    %v421 = vsel %vm419, %v391, 0
    %v424 = vsel %vm419, %v392, 0
    %v427 = vsel %vm419, %v393, 0
    %v430 = vsel %vm419, %v394, 0
    %432 = vmatprep.subr.mxu0 %v360
    %433 = vmatpush1.msra.mxu0 %v359
    %434 = vmatprep.subr.mxu0 %v364
    %435 = vmatpush1.msra.mxu0 %v363
    %436 = vmatprep.subr.mxu0 %v368
    %437 = vmatpush1.msra.mxu0 %v367
    %438 = vmatprep.subr.mxu0 %v372
    %439 = vmatpush1.msra.mxu0 %v371
    %440 = vmatprep.subr.mxu0 %v376
    %441 = vmatpush1.msra.mxu0 %v375
    %442 = vmatprep.subr.mxu0 %v380
    %443 = vmatpush1.msra.mxu0 %v379
    %444 = vmatprep.subr.mxu0 %v384
    %445 = vmatpush1.msra.mxu0 %v383
    %446 = vmatprep.subr.mxu0 %v388
    %447 = vmatpush1.msra.mxu0 %v387
    %448 = vmatprep.subr.mxu0 0.0
    %449 = vmatpush1.msra.mxu0 0.0
    %450 = vmatprep.subr.mxu0 0.0
    %451 = vmatpush1.msra.mxu0 0.0
    %452 = vmatprep.subr.mxu0 0.0
    %453 = vmatpush1.msra.mxu0 0.0
    %454 = vmatprep.subr.mxu0 0.0
    %455 = vmatpush1.msra.mxu0 0.0
    %456 = vmatprep.subr.mxu0 0.0
    %457 = vmatpush1.msra.mxu0 0.0
    %458 = vmatprep.subr.mxu0 0.0
    %459 = vmatpush1.msra.mxu0 0.0
    %460 = vmatprep.subr.mxu0 0.0
    %461 = vmatpush1.msra.mxu0 0.0
    %462 = vmatprep.subr.mxu0 0.0
    %463 = vmatpush1.msra.mxu0 0.0
    %464 = vmatprep.subr.mxu0 0.0
    %465 = vmatpush1.msra.mxu0 0.0
    %466 = vmatprep.subr.mxu0 0.0
    %467 = vmatpush1.msra.mxu0 0.0
    %468 = vmatprep.subr.mxu0 0.0
    %469 = vmatpush1.msra.mxu0 0.0
    %470 = vmatprep.subr.mxu0 0.0
    %471 = vmatpush1.msra.mxu0 0.0
    %472 = vmatprep.subr.mxu0 0.0
    %473 = vmatpush1.msra.mxu0 0.0
    %474 = vmatprep.subr.mxu0 0.0
    %475 = vmatpush1.msra.mxu0 0.0
    %476 = vmatprep.subr.mxu0 0.0
    %477 = vmatpush1.msra.mxu0 0.0
    %478 = vmatprep.subr.mxu0 0.0
    %479 = vmatpush1.msra.mxu0 0.0
    %480 = vmatprep.subr.mxu0 0.0
    %481 = vmatpush1.msra.mxu0 0.0
    %482 = vmatprep.subr.mxu0 0.0
    %483 = vmatpush1.msra.mxu0 0.0
    %484 = vmatprep.subr.mxu0 0.0
    %485 = vmatpush1.msra.mxu0 0.0
    %486 = vmatprep.subr.mxu0 0.0
    %487 = vmatpush1.msra.mxu0 0.0
    %488 = vmatprep.subr.mxu0 0.0
    %489 = vmatpush1.msra.mxu0 0.0
    %490 = vmatprep.subr.mxu0 0.0
    %491 = vmatpush1.msra.mxu0 0.0
    %492 = vmatprep.subr.mxu0 0.0
    %493 = vmatpush1.msra.mxu0 0.0
    %494 = vmatprep.subr.mxu0 0.0
    %495 = vmatpush1.msra.mxu0 0.0
    %496 = vmatprep.mubr.f32.mxu0 0.0
    %497 = vmatmul.mubr.f32.gmra.mrb[0].mxu0 %v421
    %v498 = vpop.f32.mrb[0].mxu0
    %v499 = vadd.f32 %v402, %v498
    %v500 = vpop.f32.mrb[0].mxu0
    %v501 = vadd.f32 %v402, %v500
    %502 = vmatprep.mubr.f32.mxu0 0.0
    %503 = vmatmul.mubr.f32.gmra.mrb[0].mxu0 %v424
    %v504 = vpop.f32.mrb[0].mxu0
    %v505 = vadd.f32 %v407, %v504
    %v506 = vpop.f32.mrb[0].mxu0
    %v507 = vadd.f32 %v407, %v506
    %508 = vmatprep.mubr.f32.mxu0 0.0
    %509 = vmatmul.mubr.f32.gmra.mrb[0].mxu0 %v427
    %v510 = vpop.f32.mrb[0].mxu0
    %v511 = vadd.f32 %v412, %v510
    %v512 = vpop.f32.mrb[0].mxu0
    %v513 = vadd.f32 %v412, %v512
    %514 = vmatprep.mubr.f32.mxu0 0.0
    %515 = vmatmul.mubr.f32.gmra.mrb[0].mxu0 %v430
    %v516 = vpop.f32.mrb[0].mxu0
    %v517 = vadd.f32 %v417, %v516
    %v518 = vpop.f32.mrb[0].mxu0
    %v519 = vadd.f32 %v417, %v518
    %520 = vdwg.mxu0
    %521 = vmatprep.subr.mxu0 %v362
    %522 = vmatpush1.msra.mxu0 %v361
    %523 = vmatprep.subr.mxu0 %v366
    %524 = vmatpush1.msra.mxu0 %v365
    %525 = vmatprep.subr.mxu0 %v370
    %526 = vmatpush1.msra.mxu0 %v369
    %527 = vmatprep.subr.mxu0 %v374
    %528 = vmatpush1.msra.mxu0 %v373
    %529 = vmatprep.subr.mxu0 %v378
    %530 = vmatpush1.msra.mxu0 %v377
    %531 = vmatprep.subr.mxu0 %v382
    %532 = vmatpush1.msra.mxu0 %v381
    %533 = vmatprep.subr.mxu0 %v386
    %534 = vmatpush1.msra.mxu0 %v385
    %535 = vmatprep.subr.mxu0 %v390
    %536 = vmatpush1.msra.mxu0 %v389
    %537 = vmatprep.subr.mxu0 0.0
    %538 = vmatpush1.msra.mxu0 0.0
    %539 = vmatprep.subr.mxu0 0.0
    %540 = vmatpush1.msra.mxu0 0.0
    %541 = vmatprep.subr.mxu0 0.0
    %542 = vmatpush1.msra.mxu0 0.0
    %543 = vmatprep.subr.mxu0 0.0
    %544 = vmatpush1.msra.mxu0 0.0
    %545 = vmatprep.subr.mxu0 0.0
    %546 = vmatpush1.msra.mxu0 0.0
    %547 = vmatprep.subr.mxu0 0.0
    %548 = vmatpush1.msra.mxu0 0.0
    %549 = vmatprep.subr.mxu0 0.0
    %550 = vmatpush1.msra.mxu0 0.0
    %551 = vmatprep.subr.mxu0 0.0
    %552 = vmatpush1.msra.mxu0 0.0
    %553 = vmatprep.subr.mxu0 0.0
    %554 = vmatpush1.msra.mxu0 0.0
    %555 = vmatprep.subr.mxu0 0.0
    %556 = vmatpush1.msra.mxu0 0.0
    %557 = vmatprep.subr.mxu0 0.0
    %558 = vmatpush1.msra.mxu0 0.0
    %559 = vmatprep.subr.mxu0 0.0
    %560 = vmatpush1.msra.mxu0 0.0
    %561 = vmatprep.subr.mxu0 0.0
    %562 = vmatpush1.msra.mxu0 0.0
    %563 = vmatprep.subr.mxu0 0.0
    %564 = vmatpush1.msra.mxu0 0.0
    %565 = vmatprep.subr.mxu0 0.0
    %566 = vmatpush1.msra.mxu0 0.0
    %567 = vmatprep.subr.mxu0 0.0
    %568 = vmatpush1.msra.mxu0 0.0
    %569 = vmatprep.subr.mxu0 0.0
    %570 = vmatpush1.msra.mxu0 0.0
    %571 = vmatprep.subr.mxu0 0.0
    %572 = vmatpush1.msra.mxu0 0.0
    %573 = vmatprep.subr.mxu0 0.0
    %574 = vmatpush1.msra.mxu0 0.0
    %575 = vmatprep.subr.mxu0 0.0
    %576 = vmatpush1.msra.mxu0 0.0
    %577 = vmatprep.subr.mxu0 0.0
    %578 = vmatpush1.msra.mxu0 0.0
    %579 = vmatprep.subr.mxu0 0.0
    %580 = vmatpush1.msra.mxu0 0.0
    %581 = vmatprep.subr.mxu0 0.0
    %582 = vmatpush1.msra.mxu0 0.0
    %583 = vmatprep.subr.mxu0 0.0
    %584 = vmatpush1.msra.mxu0 0.0
    %585 = vmatprep.mubr.f32.mxu0 0.0
    %586 = vmatmul.mubr.f32.gmra.mrb[0].mxu0 %v421
    %v587 = vpop.f32.mrb[0].mxu0
    %v588 = vadd.f32 %v402, %v587
    %v589 = vpop.f32.mrb[0].mxu0
    %v590 = vadd.f32 %v402, %v589
    %591 = vmatprep.mubr.f32.mxu0 0.0
    %592 = vmatmul.mubr.f32.gmra.mrb[0].mxu0 %v424
    %v593 = vpop.f32.mrb[0].mxu0
    %v594 = vadd.f32 %v407, %v593
    %v595 = vpop.f32.mrb[0].mxu0
    %v596 = vadd.f32 %v407, %v595
    %597 = vmatprep.mubr.f32.mxu0 0.0
    %598 = vmatmul.mubr.f32.gmra.mrb[0].mxu0 %v427
    %v599 = vpop.f32.mrb[0].mxu0
    %v600 = vadd.f32 %v412, %v599
    %v601 = vpop.f32.mrb[0].mxu0
    %v602 = vadd.f32 %v412, %v601
    %603 = vmatprep.mubr.f32.mxu0 0.0
    %604 = vmatmul.mubr.f32.gmra.mrb[0].mxu0 %v430
    %v605 = vpop.f32.mrb[0].mxu0
    %v606 = vadd.f32 %v417, %v605
    %v607 = vpop.f32.mrb[0].mxu0
    %v608 = vadd.f32 %v417, %v607
    %609 = vdwg.mxu0
    %v610 = vmax.f32 %v499, 0.0
    %v611 = vmax.f32 %v501, 0.0
    %v612 = vmax.f32 %v588, 0.0
    %v613 = vmax.f32 %v590, 0.0
    %v614 = vmax.f32 %v505, 0.0
    %v615 = vmax.f32 %v507, 0.0
    %v616 = vmax.f32 %v594, 0.0
    %v617 = vmax.f32 %v596, 0.0
    %v618 = vmax.f32 %v511, 0.0
    %v619 = vmax.f32 %v513, 0.0
    %v620 = vmax.f32 %v600, 0.0
    %v621 = vmax.f32 %v602, 0.0
    %v622 = vmax.f32 %v517, 0.0
    %v623 = vmax.f32 %v519, 0.0
    %v624 = vmax.f32 %v606, 0.0
    %v625 = vmax.f32 %v608, 0.0
    %v626 = vld [vmem:[%s6] sm:$0xff]
    %v627 = vld [vmem:[%s6 + $0x8] sm:$0xff]
    %v628 = vld [vmem:[%s6 + $0x10] sm:$0xff]
    %v629 = vld [vmem:[%s6 + $0x18] sm:$0xff]
    %v630 = vld [vmem:[%s6 + $0x20] sm:$0xff]
    %v631 = vld [vmem:[%s6 + $0x28] sm:$0xff]
    %v632 = vld [vmem:[%s6 + $0x30] sm:$0xff]
    %v633 = vld [vmem:[%s6 + $0x38] sm:$0xff]
    %v634 = vld [vmem:[%s6 + $0x40] sm:$0xff]
    %v635 = vld [vmem:[%s6 + $0x48] sm:$0xff]
    %v636 = vld [vmem:[%s6 + $0x50] sm:$0xff]
    %v637 = vld [vmem:[%s6 + $0x58] sm:$0xff]
    %v638 = vld [vmem:[%s6 + $0x60] sm:$0xff]
    %v639 = vld [vmem:[%s6 + $0x68] sm:$0xff]
    %v640 = vld [vmem:[%s6 + $0x70] sm:$0xff]
    %v641 = vld [vmem:[%s6 + $0x78] sm:$0xff]
    %v642 = vld [vmem:[%s6 + $0x80] sm:$0xff]
    %v643 = vld [vmem:[%s6 + $0x88] sm:$0xff]
    %v644 = vld [vmem:[%s6 + $0x90] sm:$0xff]
    %v645 = vld [vmem:[%s6 + $0x98] sm:$0xff]
    %v646 = vld [vmem:[%s6 + $0xa0] sm:$0xff]
    %v647 = vld [vmem:[%s6 + $0xa8] sm:$0xff]
    %v648 = vld [vmem:[%s6 + $0xb0] sm:$0xff]
    %v649 = vld [vmem:[%s6 + $0xb8] sm:$0xff]
    %v650 = vld [vmem:[%s6 + $0xc0] sm:$0xff]
    %v651 = vld [vmem:[%s6 + $0xc8] sm:$0xff]
    %v652 = vld [vmem:[%s6 + $0xd0] sm:$0xff]
    %v653 = vld [vmem:[%s6 + $0xd8] sm:$0xff]
    %v654 = vld [vmem:[%s6 + $0xe0] sm:$0xff]
    %v655 = vld [vmem:[%s6 + $0xe8] sm:$0xff]
    %v656 = vld [vmem:[%s6 + $0xf0] sm:$0xff]
    %v657 = vld [vmem:[%s6 + $0xf8] sm:$0x3]
    %v658 = vld [vmem:[%s7] sm:$0xff]
    %v659 = vld [vmem:[%s7 + $0x8] sm:$0xff]
    %v660 = vld [vmem:[%s7 + $0x10] sm:$0xff]
    %v661 = vld [vmem:[%s7 + $0x18] sm:$0xff]
    %v662 = vld [vmem:[%s7 + $0x20] sm:$0xff]
    %v663 = vld [vmem:[%s7 + $0x28] sm:$0xff]
    %v664 = vld [vmem:[%s7 + $0x30] sm:$0xff]
    %v665 = vld [vmem:[%s7 + $0x38] sm:$0xff]
    %v666 = vld [vmem:[%s7 + $0x40] sm:$0xff]
    %v667 = vld [vmem:[%s7 + $0x48] sm:$0xff]
    %v668 = vld [vmem:[%s7 + $0x50] sm:$0xff]
    %v669 = vld [vmem:[%s7 + $0x58] sm:$0xff]
    %v670 = vld [vmem:[%s7 + $0x60] sm:$0xff]
    %v671 = vld [vmem:[%s7 + $0x68] sm:$0xff]
    %v672 = vld [vmem:[%s7 + $0x70] sm:$0xff]
    %v673 = vld [vmem:[%s7 + $0x78] sm:$0xff]
    %v674 = vld [vmem:[%s7 + $0x80] sm:$0xff]
    %v675 = vld [vmem:[%s7 + $0x88] sm:$0xff]
    %v676 = vld [vmem:[%s7 + $0x90] sm:$0xff]
    %v677 = vld [vmem:[%s7 + $0x98] sm:$0xff]
    %v678 = vld [vmem:[%s7 + $0xa0] sm:$0xff]
    %v679 = vld [vmem:[%s7 + $0xa8] sm:$0xff]
    %v680 = vld [vmem:[%s7 + $0xb0] sm:$0xff]
    %v681 = vld [vmem:[%s7 + $0xb8] sm:$0xff]
    %v682 = vld [vmem:[%s7 + $0xc0] sm:$0xff]
    %v683 = vld [vmem:[%s7 + $0xc8] sm:$0xff]
    %v684 = vld [vmem:[%s7 + $0xd0] sm:$0xff]
    %v685 = vld [vmem:[%s7 + $0xd8] sm:$0xff]
    %v686 = vld [vmem:[%s7 + $0xe0] sm:$0xff]
    %v687 = vld [vmem:[%s7 + $0xe8] sm:$0xff]
    %v688 = vld [vmem:[%s7 + $0xf0] sm:$0xff]
    %v689 = vld [vmem:[%s7 + $0xf8] sm:$0x3]
    %v690 = vld [vmem:[%s8] sm:$0xff]
    %v691 = vld [vmem:[%s8 + $0x8] sm:$0xff]
    %v692 = vld [vmem:[%s8 + $0x10] sm:$0xff]
    %v693 = vld [vmem:[%s8 + $0x18] sm:$0xff]
    %v694 = vld [vmem:[%s8 + $0x20] sm:$0xff]
    %v695 = vld [vmem:[%s8 + $0x28] sm:$0xff]
    %v696 = vld [vmem:[%s8 + $0x30] sm:$0xff]
    %v697 = vld [vmem:[%s8 + $0x38] sm:$0xff]
    %v698 = vld [vmem:[%s8 + $0x40] sm:$0xff]
    %v699 = vld [vmem:[%s8 + $0x48] sm:$0xff]
    %v700 = vld [vmem:[%s8 + $0x50] sm:$0xff]
    %v701 = vld [vmem:[%s8 + $0x58] sm:$0xff]
    %v702 = vld [vmem:[%s8 + $0x60] sm:$0xff]
    %v703 = vld [vmem:[%s8 + $0x68] sm:$0xff]
    %v704 = vld [vmem:[%s8 + $0x70] sm:$0xff]
    %v705 = vld [vmem:[%s8 + $0x78] sm:$0xff]
    %v706 = vld [vmem:[%s8 + $0x80] sm:$0xff]
    %v707 = vld [vmem:[%s8 + $0x88] sm:$0xff]
    %v708 = vld [vmem:[%s8 + $0x90] sm:$0xff]
    %v709 = vld [vmem:[%s8 + $0x98] sm:$0xff]
    %v710 = vld [vmem:[%s8 + $0xa0] sm:$0xff]
    %v711 = vld [vmem:[%s8 + $0xa8] sm:$0xff]
    %v712 = vld [vmem:[%s8 + $0xb0] sm:$0xff]
    %v713 = vld [vmem:[%s8 + $0xb8] sm:$0xff]
    %v714 = vld [vmem:[%s8 + $0xc0] sm:$0xff]
    %v715 = vld [vmem:[%s8 + $0xc8] sm:$0xff]
    %v716 = vld [vmem:[%s8 + $0xd0] sm:$0xff]
    %v717 = vld [vmem:[%s8 + $0xd8] sm:$0xff]
    %v718 = vld [vmem:[%s8 + $0xe0] sm:$0xff]
    %v719 = vld [vmem:[%s8 + $0xe8] sm:$0xff]
    %v720 = vld [vmem:[%s8 + $0xf0] sm:$0xff]
    %v721 = vld [vmem:[%s8 + $0xf8] sm:$0x3]
    %v722 = vld [vmem:[%s5] sm:$0xff]
    %v723 = vld [vmem:[%s5 + $0x8] sm:$0xff]
    %v724 = vld [vmem:[%s5 + $0x10] sm:$0xff]
    %v725 = vld [vmem:[%s5 + $0x18] sm:$0xff]
    %v726 = vld [vmem:[%s5 + $0x20] sm:$0xff]
    %v727 = vld [vmem:[%s5 + $0x28] sm:$0xff]
    %v728 = vld [vmem:[%s5 + $0x30] sm:$0xff]
    %v729 = vld [vmem:[%s5 + $0x38] sm:$0xff]
    %v730 = vld [vmem:[%s5 + $0x40] sm:$0xff]
    %v731 = vld [vmem:[%s5 + $0x48] sm:$0xff]
    %v732 = vld [vmem:[%s5 + $0x50] sm:$0xff]
    %v733 = vld [vmem:[%s5 + $0x58] sm:$0xff]
    %v734 = vld [vmem:[%s5 + $0x60] sm:$0xff]
    %v735 = vld [vmem:[%s5 + $0x68] sm:$0xff]
    %v736 = vld [vmem:[%s5 + $0x70] sm:$0xff]
    %v737 = vld [vmem:[%s5 + $0x78] sm:$0xff]
    %v738 = vld [vmem:[%s5 + $0x80] sm:$0xff]
    %v739 = vld [vmem:[%s5 + $0x88] sm:$0xff]
    %v740 = vld [vmem:[%s5 + $0x90] sm:$0xff]
    %v741 = vld [vmem:[%s5 + $0x98] sm:$0xff]
    %v742 = vld [vmem:[%s5 + $0xa0] sm:$0xff]
    %v743 = vld [vmem:[%s5 + $0xa8] sm:$0xff]
    %v744 = vld [vmem:[%s5 + $0xb0] sm:$0xff]
    %v745 = vld [vmem:[%s5 + $0xb8] sm:$0xff]
    %v746 = vld [vmem:[%s5 + $0xc0] sm:$0xff]
    %v747 = vld [vmem:[%s5 + $0xc8] sm:$0xff]
    %v748 = vld [vmem:[%s5 + $0xd0] sm:$0xff]
    %v749 = vld [vmem:[%s5 + $0xd8] sm:$0xff]
    %v750 = vld [vmem:[%s5 + $0xe0] sm:$0xff]
    %v751 = vld [vmem:[%s5 + $0xe8] sm:$0xff]
    %v752 = vld [vmem:[%s5 + $0xf0] sm:$0xff]
    %v753 = vld [vmem:[%s5 + $0xf8] sm:$0xff]
    %754 = vmatprep.subr.mxu0 0.0
    %755 = vmatpush1.msra.mxu0 %v722
    %756 = vmatprep.subr.mxu0 0.0
    %757 = vmatpush1.msra.mxu0 %v723
    %758 = vmatprep.subr.mxu0 0.0
    %759 = vmatpush1.msra.mxu0 %v724
    %760 = vmatprep.subr.mxu0 0.0
    %761 = vmatpush1.msra.mxu0 %v725
    %762 = vmatprep.subr.mxu0 0.0
    %763 = vmatpush1.msra.mxu0 %v726
    %764 = vmatprep.subr.mxu0 0.0
    %765 = vmatpush1.msra.mxu0 %v727
    %766 = vmatprep.subr.mxu0 0.0
    %767 = vmatpush1.msra.mxu0 %v728
    %768 = vmatprep.subr.mxu0 0.0
    %769 = vmatpush1.msra.mxu0 %v729
    %770 = vmatprep.subr.mxu0 0.0
    %771 = vmatpush1.msra.mxu0 %v730
    %772 = vmatprep.subr.mxu0 0.0
    %773 = vmatpush1.msra.mxu0 %v731
    %774 = vmatprep.subr.mxu0 0.0
    %775 = vmatpush1.msra.mxu0 %v732
    %776 = vmatprep.subr.mxu0 0.0
    %777 = vmatpush1.msra.mxu0 %v733
    %778 = vmatprep.subr.mxu0 0.0
    %779 = vmatpush1.msra.mxu0 %v734
    %780 = vmatprep.subr.mxu0 0.0
    %781 = vmatpush1.msra.mxu0 %v735
    %782 = vmatprep.subr.mxu0 0.0
    %783 = vmatpush1.msra.mxu0 %v736
    %784 = vmatprep.subr.mxu0 0.0
    %785 = vmatpush1.msra.mxu0 %v737
    %786 = vmatprep.subr.mxu0 0.0
    %787 = vmatpush1.msra.mxu0 %v738
    %788 = vmatprep.subr.mxu0 0.0
    %789 = vmatpush1.msra.mxu0 %v739
    %790 = vmatprep.subr.mxu0 0.0
    %791 = vmatpush1.msra.mxu0 %v740
    %792 = vmatprep.subr.mxu0 0.0
    %793 = vmatpush1.msra.mxu0 %v741
    %794 = vmatprep.subr.mxu0 0.0
    %795 = vmatpush1.msra.mxu0 %v742
    %796 = vmatprep.subr.mxu0 0.0
    %797 = vmatpush1.msra.mxu0 %v743
    %798 = vmatprep.subr.mxu0 0.0
    %799 = vmatpush1.msra.mxu0 %v744
    %800 = vmatprep.subr.mxu0 0.0
    %801 = vmatpush1.msra.mxu0 %v745
    %802 = vmatprep.subr.mxu0 0.0
    %803 = vmatpush1.msra.mxu0 %v746
    %804 = vmatprep.subr.mxu0 0.0
    %805 = vmatpush1.msra.mxu0 %v747
    %806 = vmatprep.subr.mxu0 0.0
    %807 = vmatpush1.msra.mxu0 %v748
    %808 = vmatprep.subr.mxu0 0.0
    %809 = vmatpush1.msra.mxu0 %v749
    %810 = vmatprep.subr.mxu0 0.0
    %811 = vmatpush1.msra.mxu0 %v750
    %812 = vmatprep.subr.mxu0 0.0
    %813 = vmatpush1.msra.mxu0 %v751
    %814 = vmatprep.subr.mxu0 0.0
    %815 = vmatpush1.msra.mxu0 %v752
    %816 = vmatprep.subr.mxu0 0.0
    %817 = vmatpush1.msra.mxu0 %v753
    %818 = vmatprep.mubr.f32.mxu0 %v611
    %819 = vmatmul.mubr.f32.gmra.mrb[0].mxu0 %v610
    %v820 = vpop.f32.mrb[0].mxu0
    %v821 = vadd.f32 0.0, %v820
    %v822 = vpop.f32.mrb[0].mxu0
    %823 = vmatprep.mubr.f32.mxu0 %v615
    %824 = vmatmul.mubr.f32.gmra.mrb[0].mxu0 %v614
    %v825 = vpop.f32.mrb[0].mxu0
    %v826 = vadd.f32 0.0, %v825
    %v827 = vpop.f32.mrb[0].mxu0
    %828 = vmatprep.mubr.f32.mxu0 %v619
    %829 = vmatmul.mubr.f32.gmra.mrb[0].mxu0 %v618
    %v830 = vpop.f32.mrb[0].mxu0
    %v831 = vadd.f32 0.0, %v830
    %v832 = vpop.f32.mrb[0].mxu0
    %833 = vmatprep.mubr.f32.mxu0 %v623
    %834 = vmatmul.mubr.f32.gmra.mrb[0].mxu0 %v622
    %v835 = vpop.f32.mrb[0].mxu0
    %v836 = vadd.f32 0.0, %v835
    %v837 = vpop.f32.mrb[0].mxu0
    %838 = vdwg.mxu0
    %vm839 = vcmask 261120
    %v841 = vsel %vm839, %v626, 0
    %v844 = vsel %vm839, %v627, 0
    %v847 = vsel %vm839, %v628, 0
    %v850 = vsel %vm839, %v629, 0
    %v853 = vsel %vm839, %v630, 0
    %v856 = vsel %vm839, %v631, 0
    %v859 = vsel %vm839, %v632, 0
    %v862 = vsel %vm839, %v633, 0
    %v865 = vsel %vm839, %v634, 0
    %v868 = vsel %vm839, %v635, 0
    %v871 = vsel %vm839, %v636, 0
    %v874 = vsel %vm839, %v637, 0
    %v877 = vsel %vm839, %v638, 0
    %v880 = vsel %vm839, %v639, 0
    %v883 = vsel %vm839, %v640, 0
    %v886 = vsel %vm839, %v641, 0
    %v889 = vsel %vm839, %v642, 0
    %v892 = vsel %vm839, %v643, 0
    %v895 = vsel %vm839, %v644, 0
    %v898 = vsel %vm839, %v645, 0
    %v901 = vsel %vm839, %v646, 0
    %v904 = vsel %vm839, %v647, 0
    %v907 = vsel %vm839, %v648, 0
    %v910 = vsel %vm839, %v649, 0
    %v913 = vsel %vm839, %v650, 0
    %v916 = vsel %vm839, %v651, 0
    %v919 = vsel %vm839, %v652, 0
    %v922 = vsel %vm839, %v653, 0
    %v925 = vsel %vm839, %v654, 0
    %v928 = vsel %vm839, %v655, 0
    %v931 = vsel %vm839, %v656, 0
    %v934 = vsel %vm839, %v657, 0
    %936 = vmatprep.subr.mxu0 0.0
    %937 = vmatpush1.msra.mxu0 %v821
    %938 = vmatprep.subr.mxu0 0.0
    %939 = vmatpush1.msra.mxu0 %v826
    %940 = vmatprep.subr.mxu0 0.0
    %941 = vmatpush1.msra.mxu0 %v831
    %942 = vmatprep.subr.mxu0 0.0
    %943 = vmatpush1.msra.mxu0 %v836
    %944 = vmatprep.subr.mxu0 0.0
    %945 = vmatpush1.msra.mxu0 0.0
    %946 = vmatprep.subr.mxu0 0.0
    %947 = vmatpush1.msra.mxu0 0.0
    %948 = vmatprep.subr.mxu0 0.0
    %949 = vmatpush1.msra.mxu0 0.0
    %950 = vmatprep.subr.mxu0 0.0
    %951 = vmatpush1.msra.mxu0 0.0
    %952 = vmatprep.subr.mxu0 0.0
    %953 = vmatpush1.msra.mxu0 0.0
    %954 = vmatprep.subr.mxu0 0.0
    %955 = vmatpush1.msra.mxu0 0.0
    %956 = vmatprep.subr.mxu0 0.0
    %957 = vmatpush1.msra.mxu0 0.0
    %958 = vmatprep.subr.mxu0 0.0
    %959 = vmatpush1.msra.mxu0 0.0
    %960 = vmatprep.subr.mxu0 0.0
    %961 = vmatpush1.msra.mxu0 0.0
    %962 = vmatprep.subr.mxu0 0.0
    %963 = vmatpush1.msra.mxu0 0.0
    %964 = vmatprep.subr.mxu0 0.0
    %965 = vmatpush1.msra.mxu0 0.0
    %966 = vmatprep.subr.mxu0 0.0
    %967 = vmatpush1.msra.mxu0 0.0
    %968 = vmatprep.subr.mxu0 0.0
    %969 = vmatpush1.msra.mxu0 0.0
    %970 = vmatprep.subr.mxu0 0.0
    %971 = vmatpush1.msra.mxu0 0.0
    %972 = vmatprep.subr.mxu0 0.0
    %973 = vmatpush1.msra.mxu0 0.0
    %974 = vmatprep.subr.mxu0 0.0
    %975 = vmatpush1.msra.mxu0 0.0
    %976 = vmatprep.subr.mxu0 0.0
    %977 = vmatpush1.msra.mxu0 0.0
    %978 = vmatprep.subr.mxu0 0.0
    %979 = vmatpush1.msra.mxu0 0.0
    %980 = vmatprep.subr.mxu0 0.0
    %981 = vmatpush1.msra.mxu0 0.0
    %982 = vmatprep.subr.mxu0 0.0
    %983 = vmatpush1.msra.mxu0 0.0
    %984 = vmatprep.subr.mxu0 0.0
    %985 = vmatpush1.msra.mxu0 0.0
    %986 = vmatprep.subr.mxu0 0.0
    %987 = vmatpush1.msra.mxu0 0.0
    %988 = vmatprep.subr.mxu0 0.0
    %989 = vmatpush1.msra.mxu0 0.0
    %990 = vmatprep.subr.mxu0 0.0
    %991 = vmatpush1.msra.mxu0 0.0
    %992 = vmatprep.subr.mxu0 0.0
    %993 = vmatpush1.msra.mxu0 0.0
    %994 = vmatprep.subr.mxu0 0.0
    %995 = vmatpush1.msra.mxu0 0.0
    %996 = vmatprep.subr.mxu0 0.0
    %997 = vmatpush1.msra.mxu0 0.0
    %998 = vmatprep.subr.mxu0 0.0
    %999 = vmatpush1.msra.mxu0 0.0
    %1000 = vmatprep.mubr.f32.mxu0 0.0
    %1001 = vmatmul.mubr.f32.gmra.mrb[0].mxu0 %v841
    %v1002 = vpop.f32.mrb[0].mxu0
    %v1003 = vadd.f32 0.0, %v1002
    %v1004 = vpop.f32.mrb[0].mxu0
    %1005 = vmatprep.mubr.f32.mxu0 0.0
    %1006 = vmatmul.mubr.f32.gmra.mrb[0].mxu0 %v844
    %v1007 = vpop.f32.mrb[0].mxu0
    %v1008 = vadd.f32 0.0, %v1007
    %v1009 = vpop.f32.mrb[0].mxu0
    %1010 = vmatprep.mubr.f32.mxu0 0.0
    %1011 = vmatmul.mubr.f32.gmra.mrb[0].mxu0 %v847
    %v1012 = vpop.f32.mrb[0].mxu0
    %v1013 = vadd.f32 0.0, %v1012
    %v1014 = vpop.f32.mrb[0].mxu0
    %1015 = vmatprep.mubr.f32.mxu0 0.0
    %1016 = vmatmul.mubr.f32.gmra.mrb[0].mxu0 %v850
    %v1017 = vpop.f32.mrb[0].mxu0
    %v1018 = vadd.f32 0.0, %v1017
    %v1019 = vpop.f32.mrb[0].mxu0
    %1020 = vmatprep.mubr.f32.mxu0 0.0
    %1021 = vmatmul.mubr.f32.gmra.mrb[0].mxu0 %v853
    %v1022 = vpop.f32.mrb[0].mxu0
    %v1023 = vadd.f32 0.0, %v1022
    %v1024 = vpop.f32.mrb[0].mxu0
    %1025 = vmatprep.mubr.f32.mxu0 0.0
    %1026 = vmatmul.mubr.f32.gmra.mrb[0].mxu0 %v856
    %v1027 = vpop.f32.mrb[0].mxu0
    %v1028 = vadd.f32 0.0, %v1027
    %v1029 = vpop.f32.mrb[0].mxu0
    %1030 = vmatprep.mubr.f32.mxu0 0.0
    %1031 = vmatmul.mubr.f32.gmra.mrb[0].mxu0 %v859
    %v1032 = vpop.f32.mrb[0].mxu0
    %v1033 = vadd.f32 0.0, %v1032
    %v1034 = vpop.f32.mrb[0].mxu0
    %1035 = vmatprep.mubr.f32.mxu0 0.0
    %1036 = vmatmul.mubr.f32.gmra.mrb[0].mxu0 %v862
    %v1037 = vpop.f32.mrb[0].mxu0
    %v1038 = vadd.f32 0.0, %v1037
    %v1039 = vpop.f32.mrb[0].mxu0
    %1040 = vmatprep.mubr.f32.mxu0 0.0
    %1041 = vmatmul.mubr.f32.gmra.mrb[0].mxu0 %v865
    %v1042 = vpop.f32.mrb[0].mxu0
    %v1043 = vadd.f32 0.0, %v1042
    %v1044 = vpop.f32.mrb[0].mxu0
    %1045 = vmatprep.mubr.f32.mxu0 0.0
    %1046 = vmatmul.mubr.f32.gmra.mrb[0].mxu0 %v868
    %v1047 = vpop.f32.mrb[0].mxu0
    %v1048 = vadd.f32 0.0, %v1047
    %v1049 = vpop.f32.mrb[0].mxu0
    %1050 = vmatprep.mubr.f32.mxu0 0.0
    %1051 = vmatmul.mubr.f32.gmra.mrb[0].mxu0 %v871
    %v1052 = vpop.f32.mrb[0].mxu0
    %v1053 = vadd.f32 0.0, %v1052
    %v1054 = vpop.f32.mrb[0].mxu0
    %1055 = vmatprep.mubr.f32.mxu0 0.0
    %1056 = vmatmul.mubr.f32.gmra.mrb[0].mxu0 %v874
    %v1057 = vpop.f32.mrb[0].mxu0
    %v1058 = vadd.f32 0.0, %v1057
    %v1059 = vpop.f32.mrb[0].mxu0
    %1060 = vmatprep.mubr.f32.mxu0 0.0
    %1061 = vmatmul.mubr.f32.gmra.mrb[0].mxu0 %v877
    %v1062 = vpop.f32.mrb[0].mxu0
    %v1063 = vadd.f32 0.0, %v1062
    %v1064 = vpop.f32.mrb[0].mxu0
    %1065 = vmatprep.mubr.f32.mxu0 0.0
    %1066 = vmatmul.mubr.f32.gmra.mrb[0].mxu0 %v880
    %v1067 = vpop.f32.mrb[0].mxu0
    %v1068 = vadd.f32 0.0, %v1067
    %v1069 = vpop.f32.mrb[0].mxu0
    %1070 = vmatprep.mubr.f32.mxu0 0.0
    %1071 = vmatmul.mubr.f32.gmra.mrb[0].mxu0 %v883
    %v1072 = vpop.f32.mrb[0].mxu0
    %v1073 = vadd.f32 0.0, %v1072
    %v1074 = vpop.f32.mrb[0].mxu0
    %1075 = vmatprep.mubr.f32.mxu0 0.0
    %1076 = vmatmul.mubr.f32.gmra.mrb[0].mxu0 %v886
    %v1077 = vpop.f32.mrb[0].mxu0
    %v1078 = vadd.f32 0.0, %v1077
    %v1079 = vpop.f32.mrb[0].mxu0
    %1080 = vmatprep.mubr.f32.mxu0 0.0
    %1081 = vmatmul.mubr.f32.gmra.mrb[0].mxu0 %v889
    %v1082 = vpop.f32.mrb[0].mxu0
    %v1083 = vadd.f32 0.0, %v1082
    %v1084 = vpop.f32.mrb[0].mxu0
    %1085 = vmatprep.mubr.f32.mxu0 0.0
    %1086 = vmatmul.mubr.f32.gmra.mrb[0].mxu0 %v892
    %v1087 = vpop.f32.mrb[0].mxu0
    %v1088 = vadd.f32 0.0, %v1087
    %v1089 = vpop.f32.mrb[0].mxu0
    %1090 = vmatprep.mubr.f32.mxu0 0.0
    %1091 = vmatmul.mubr.f32.gmra.mrb[0].mxu0 %v895
    %v1092 = vpop.f32.mrb[0].mxu0
    %v1093 = vadd.f32 0.0, %v1092
    %v1094 = vpop.f32.mrb[0].mxu0
    %1095 = vmatprep.mubr.f32.mxu0 0.0
    %1096 = vmatmul.mubr.f32.gmra.mrb[0].mxu0 %v898
    %v1097 = vpop.f32.mrb[0].mxu0
    %v1098 = vadd.f32 0.0, %v1097
    %v1099 = vpop.f32.mrb[0].mxu0
    %1100 = vmatprep.mubr.f32.mxu0 0.0
    %1101 = vmatmul.mubr.f32.gmra.mrb[0].mxu0 %v901
    %v1102 = vpop.f32.mrb[0].mxu0
    %v1103 = vadd.f32 0.0, %v1102
    %v1104 = vpop.f32.mrb[0].mxu0
    %1105 = vmatprep.mubr.f32.mxu0 0.0
    %1106 = vmatmul.mubr.f32.gmra.mrb[0].mxu0 %v904
    %v1107 = vpop.f32.mrb[0].mxu0
    %v1108 = vadd.f32 0.0, %v1107
    %v1109 = vpop.f32.mrb[0].mxu0
    %1110 = vmatprep.mubr.f32.mxu0 0.0
    %1111 = vmatmul.mubr.f32.gmra.mrb[0].mxu0 %v907
    %v1112 = vpop.f32.mrb[0].mxu0
    %v1113 = vadd.f32 0.0, %v1112
    %v1114 = vpop.f32.mrb[0].mxu0
    %1115 = vmatprep.mubr.f32.mxu0 0.0
    %1116 = vmatmul.mubr.f32.gmra.mrb[0].mxu0 %v910
    %v1117 = vpop.f32.mrb[0].mxu0
    %v1118 = vadd.f32 0.0, %v1117
    %v1119 = vpop.f32.mrb[0].mxu0
    %1120 = vmatprep.mubr.f32.mxu0 0.0
    %1121 = vmatmul.mubr.f32.gmra.mrb[0].mxu0 %v913
    %v1122 = vpop.f32.mrb[0].mxu0
    %v1123 = vadd.f32 0.0, %v1122
    %v1124 = vpop.f32.mrb[0].mxu0
    %1125 = vmatprep.mubr.f32.mxu0 0.0
    %1126 = vmatmul.mubr.f32.gmra.mrb[0].mxu0 %v916
    %v1127 = vpop.f32.mrb[0].mxu0
    %v1128 = vadd.f32 0.0, %v1127
    %v1129 = vpop.f32.mrb[0].mxu0
    %1130 = vmatprep.mubr.f32.mxu0 0.0
    %1131 = vmatmul.mubr.f32.gmra.mrb[0].mxu0 %v919
    %v1132 = vpop.f32.mrb[0].mxu0
    %v1133 = vadd.f32 0.0, %v1132
    %v1134 = vpop.f32.mrb[0].mxu0
    %1135 = vmatprep.mubr.f32.mxu0 0.0
    %1136 = vmatmul.mubr.f32.gmra.mrb[0].mxu0 %v922
    %v1137 = vpop.f32.mrb[0].mxu0
    %v1138 = vadd.f32 0.0, %v1137
    %v1139 = vpop.f32.mrb[0].mxu0
    %1140 = vmatprep.mubr.f32.mxu0 0.0
    %1141 = vmatmul.mubr.f32.gmra.mrb[0].mxu0 %v925
    %v1142 = vpop.f32.mrb[0].mxu0
    %v1143 = vadd.f32 0.0, %v1142
    %v1144 = vpop.f32.mrb[0].mxu0
    %1145 = vmatprep.mubr.f32.mxu0 0.0
    %1146 = vmatmul.mubr.f32.gmra.mrb[0].mxu0 %v928
    %v1147 = vpop.f32.mrb[0].mxu0
    %v1148 = vadd.f32 0.0, %v1147
    %v1149 = vpop.f32.mrb[0].mxu0
    %1150 = vmatprep.mubr.f32.mxu0 0.0
    %1151 = vmatmul.mubr.f32.gmra.mrb[0].mxu0 %v931
    %v1152 = vpop.f32.mrb[0].mxu0
    %v1153 = vadd.f32 0.0, %v1152
    %v1154 = vpop.f32.mrb[0].mxu0
    %1155 = vmatprep.mubr.f32.mxu0 0.0
    %1156 = vmatmul.mubr.f32.gmra.mrb[0].mxu0 %v934
    %v1157 = vpop.f32.mrb[0].mxu0
    %v1158 = vadd.f32 0.0, %v1157
    %v1159 = vpop.f32.mrb[0].mxu0
    %1160 = vdwg.mxu0
    %v1161 = vmul.f32 %v1003, %v658
    %v1162 = vmul.f32 %v1008, %v659
    %v1163 = vmul.f32 %v1013, %v660
    %v1164 = vmul.f32 %v1018, %v661
    %v1165 = vmul.f32 %v1023, %v662
    %v1166 = vmul.f32 %v1028, %v663
    %v1167 = vmul.f32 %v1033, %v664
    %v1168 = vmul.f32 %v1038, %v665
    %v1169 = vmul.f32 %v1043, %v666
    %v1170 = vmul.f32 %v1048, %v667
    %v1171 = vmul.f32 %v1053, %v668
    %v1172 = vmul.f32 %v1058, %v669
    %v1173 = vmul.f32 %v1063, %v670
    %v1174 = vmul.f32 %v1068, %v671
    %v1175 = vmul.f32 %v1073, %v672
    %v1176 = vmul.f32 %v1078, %v673
    %v1177 = vmul.f32 %v1083, %v674
    %v1178 = vmul.f32 %v1088, %v675
    %v1179 = vmul.f32 %v1093, %v676
    %v1180 = vmul.f32 %v1098, %v677
    %v1181 = vmul.f32 %v1103, %v678
    %v1182 = vmul.f32 %v1108, %v679
    %v1183 = vmul.f32 %v1113, %v680
    %v1184 = vmul.f32 %v1118, %v681
    %v1185 = vmul.f32 %v1123, %v682
    %v1186 = vmul.f32 %v1128, %v683
    %v1187 = vmul.f32 %v1133, %v684
    %v1188 = vmul.f32 %v1138, %v685
    %v1189 = vmul.f32 %v1143, %v686
    %v1190 = vmul.f32 %v1148, %v687
    %v1191 = vmul.f32 %v1153, %v688
    %v1192 = vmul.f32 %v1158, %v689
    %vm1193 = vcmask 203776
    %v1194 = vsel %vm1193, %v1161, 0.0
    %1195 = vadd.xlane.f32.xlu0 %v1194
    %v1196 = vpop.xlane.xlu0 %1195
    %v1197 = vsel %vm1193, %v1162, 0.0
    %1198 = vadd.xlane.f32.xlu0 %v1197
    %v1199 = vpop.xlane.xlu0 %1198
    %v1200 = vsel %vm1193, %v1163, 0.0
    %1201 = vadd.xlane.f32.xlu0 %v1200
    %v1202 = vpop.xlane.xlu0 %1201
    %v1203 = vsel %vm1193, %v1164, 0.0
    %1204 = vadd.xlane.f32.xlu0 %v1203
    %v1205 = vpop.xlane.xlu0 %1204
    %v1206 = vsel %vm1193, %v1165, 0.0
    %1207 = vadd.xlane.f32.xlu0 %v1206
    %v1208 = vpop.xlane.xlu0 %1207
    %v1209 = vsel %vm1193, %v1166, 0.0
    %1210 = vadd.xlane.f32.xlu0 %v1209
    %v1211 = vpop.xlane.xlu0 %1210
    %v1212 = vsel %vm1193, %v1167, 0.0
    %1213 = vadd.xlane.f32.xlu0 %v1212
    %v1214 = vpop.xlane.xlu0 %1213
    %v1215 = vsel %vm1193, %v1168, 0.0
    %1216 = vadd.xlane.f32.xlu0 %v1215
    %v1217 = vpop.xlane.xlu0 %1216
    %v1218 = vsel %vm1193, %v1169, 0.0
    %1219 = vadd.xlane.f32.xlu0 %v1218
    %v1220 = vpop.xlane.xlu0 %1219
    %v1221 = vsel %vm1193, %v1170, 0.0
    %1222 = vadd.xlane.f32.xlu0 %v1221
    %v1223 = vpop.xlane.xlu0 %1222
    %v1224 = vsel %vm1193, %v1171, 0.0
    %1225 = vadd.xlane.f32.xlu0 %v1224
    %v1226 = vpop.xlane.xlu0 %1225
    %v1227 = vsel %vm1193, %v1172, 0.0
    %1228 = vadd.xlane.f32.xlu0 %v1227
    %v1229 = vpop.xlane.xlu0 %1228
    %v1230 = vsel %vm1193, %v1173, 0.0
    %1231 = vadd.xlane.f32.xlu0 %v1230
    %v1232 = vpop.xlane.xlu0 %1231
    %v1233 = vsel %vm1193, %v1174, 0.0
    %1234 = vadd.xlane.f32.xlu0 %v1233
    %v1235 = vpop.xlane.xlu0 %1234
    %v1236 = vsel %vm1193, %v1175, 0.0
    %1237 = vadd.xlane.f32.xlu0 %v1236
    %v1238 = vpop.xlane.xlu0 %1237
    %v1239 = vsel %vm1193, %v1176, 0.0
    %1240 = vadd.xlane.f32.xlu0 %v1239
    %v1241 = vpop.xlane.xlu0 %1240
    %v1242 = vsel %vm1193, %v1177, 0.0
    %1243 = vadd.xlane.f32.xlu0 %v1242
    %v1244 = vpop.xlane.xlu0 %1243
    %v1245 = vsel %vm1193, %v1178, 0.0
    %1246 = vadd.xlane.f32.xlu0 %v1245
    %v1247 = vpop.xlane.xlu0 %1246
    %v1248 = vsel %vm1193, %v1179, 0.0
    %1249 = vadd.xlane.f32.xlu0 %v1248
    %v1250 = vpop.xlane.xlu0 %1249
    %v1251 = vsel %vm1193, %v1180, 0.0
    %1252 = vadd.xlane.f32.xlu0 %v1251
    %v1253 = vpop.xlane.xlu0 %1252
    %v1254 = vsel %vm1193, %v1181, 0.0
    %1255 = vadd.xlane.f32.xlu0 %v1254
    %v1256 = vpop.xlane.xlu0 %1255
    %v1257 = vsel %vm1193, %v1182, 0.0
    %1258 = vadd.xlane.f32.xlu0 %v1257
    %v1259 = vpop.xlane.xlu0 %1258
    %v1260 = vsel %vm1193, %v1183, 0.0
    %1261 = vadd.xlane.f32.xlu0 %v1260
    %v1262 = vpop.xlane.xlu0 %1261
    %v1263 = vsel %vm1193, %v1184, 0.0
    %1264 = vadd.xlane.f32.xlu0 %v1263
    %v1265 = vpop.xlane.xlu0 %1264
    %v1266 = vsel %vm1193, %v1185, 0.0
    %1267 = vadd.xlane.f32.xlu0 %v1266
    %v1268 = vpop.xlane.xlu0 %1267
    %v1269 = vsel %vm1193, %v1186, 0.0
    %1270 = vadd.xlane.f32.xlu0 %v1269
    %v1271 = vpop.xlane.xlu0 %1270
    %v1272 = vsel %vm1193, %v1187, 0.0
    %1273 = vadd.xlane.f32.xlu0 %v1272
    %v1274 = vpop.xlane.xlu0 %1273
    %v1275 = vsel %vm1193, %v1188, 0.0
    %1276 = vadd.xlane.f32.xlu0 %v1275
    %v1277 = vpop.xlane.xlu0 %1276
    %v1278 = vsel %vm1193, %v1189, 0.0
    %1279 = vadd.xlane.f32.xlu0 %v1278
    %v1280 = vpop.xlane.xlu0 %1279
    %v1281 = vsel %vm1193, %v1190, 0.0
    %1282 = vadd.xlane.f32.xlu0 %v1281
    %v1283 = vpop.xlane.xlu0 %1282
    %v1284 = vsel %vm1193, %v1191, 0.0
    %1285 = vadd.xlane.f32.xlu0 %v1284
    %v1286 = vpop.xlane.xlu0 %1285
    %vm1287 = vcmask 197632
    %v1288 = vsel %vm1287, %v1192, 0.0
    %1289 = vadd.xlane.f32.xlu0 %v1288
    %v1290 = vpop.xlane.xlu0 %1289
    %v1291 = vmul.f32 %v1196, %v690
    %v1292 = vmul.f32 %v1199, %v691
    %v1293 = vmul.f32 %v1202, %v692
    %v1294 = vmul.f32 %v1205, %v693
    %v1295 = vmul.f32 %v1208, %v694
    %v1296 = vmul.f32 %v1211, %v695
    %v1297 = vmul.f32 %v1214, %v696
    %v1298 = vmul.f32 %v1217, %v697
    %v1299 = vmul.f32 %v1220, %v698
    %v1300 = vmul.f32 %v1223, %v699
    %v1301 = vmul.f32 %v1226, %v700
    %v1302 = vmul.f32 %v1229, %v701
    %v1303 = vmul.f32 %v1232, %v702
    %v1304 = vmul.f32 %v1235, %v703
    %v1305 = vmul.f32 %v1238, %v704
    %v1306 = vmul.f32 %v1241, %v705
    %v1307 = vmul.f32 %v1244, %v706
    %v1308 = vmul.f32 %v1247, %v707
    %v1309 = vmul.f32 %v1250, %v708
    %v1310 = vmul.f32 %v1253, %v709
    %v1311 = vmul.f32 %v1256, %v710
    %v1312 = vmul.f32 %v1259, %v711
    %v1313 = vmul.f32 %v1262, %v712
    %v1314 = vmul.f32 %v1265, %v713
    %v1315 = vmul.f32 %v1268, %v714
    %v1316 = vmul.f32 %v1271, %v715
    %v1317 = vmul.f32 %v1274, %v716
    %v1318 = vmul.f32 %v1277, %v717
    %v1319 = vmul.f32 %v1280, %v718
    %v1320 = vmul.f32 %v1283, %v719
    %v1321 = vmul.f32 %v1286, %v720
    %v1322 = vmul.f32 %v1290, %v721
    %v1323 = vadd.f32 %v1291, %v1292
    %v1324 = vadd.f32 %v1323, %v1293
    %v1325 = vadd.f32 %v1324, %v1294
    %v1326 = vadd.f32 %v1325, %v1295
    %v1327 = vadd.f32 %v1326, %v1296
    %v1328 = vadd.f32 %v1327, %v1297
    %v1329 = vadd.f32 %v1328, %v1298
    %v1330 = vadd.f32 %v1329, %v1299
    %v1331 = vadd.f32 %v1330, %v1300
    %v1332 = vadd.f32 %v1331, %v1301
    %v1333 = vadd.f32 %v1332, %v1302
    %v1334 = vadd.f32 %v1333, %v1303
    %v1335 = vadd.f32 %v1334, %v1304
    %v1336 = vadd.f32 %v1335, %v1305
    %v1337 = vadd.f32 %v1336, %v1306
    %v1338 = vadd.f32 %v1337, %v1307
    %v1339 = vadd.f32 %v1338, %v1308
    %v1340 = vadd.f32 %v1339, %v1309
    %v1341 = vadd.f32 %v1340, %v1310
    %v1342 = vadd.f32 %v1341, %v1311
    %v1343 = vadd.f32 %v1342, %v1312
    %v1344 = vadd.f32 %v1343, %v1313
    %v1345 = vadd.f32 %v1344, %v1314
    %v1346 = vadd.f32 %v1345, %v1315
    %v1347 = vadd.f32 %v1346, %v1316
    %v1348 = vadd.f32 %v1347, %v1317
    %v1349 = vadd.f32 %v1348, %v1318
    %v1350 = vadd.f32 %v1349, %v1319
    %v1351 = vadd.f32 %v1350, %v1320
    %v1352 = vadd.f32 %v1351, %v1321
    %vm1353 = vcmask 1041408
    %v1354 = vsel %vm1353, %v1322, 0.0
    %v1355 = vadd.f32 %v1352, %v1354
    %v1356 = vrot.slane %v1355, 4
    %v1357 = vadd.f32 %v1355, %v1356
    %v1358 = vrot.slane %v1357, 2
    %v1359 = vadd.f32 %v1357, %v1358
    %v1360 = vrot.slane %v1359, 1
    %v1361 = vadd.f32 %v1359, %v1360
    %s1362 = scalar_lea.vmem %s5, 256
    %v1363 = vld [vmem:[%s1362] sm:$0xff]
    %v1364 = vld [vmem:[%s1362 + $0x8] sm:$0xff]
    %v1365 = vld [vmem:[%s1362 + $0x10] sm:$0xff]
    %v1366 = vld [vmem:[%s1362 + $0x18] sm:$0xff]
    %v1367 = vld [vmem:[%s1362 + $0x20] sm:$0xff]
    %v1368 = vld [vmem:[%s1362 + $0x28] sm:$0xff]
    %v1369 = vld [vmem:[%s1362 + $0x30] sm:$0xff]
    %v1370 = vld [vmem:[%s1362 + $0x38] sm:$0xff]
    %v1371 = vld [vmem:[%s1362 + $0x40] sm:$0xff]
    %v1372 = vld [vmem:[%s1362 + $0x48] sm:$0xff]
    %v1373 = vld [vmem:[%s1362 + $0x50] sm:$0xff]
    %v1374 = vld [vmem:[%s1362 + $0x58] sm:$0xff]
    %v1375 = vld [vmem:[%s1362 + $0x60] sm:$0xff]
    %v1376 = vld [vmem:[%s1362 + $0x68] sm:$0xff]
    %v1377 = vld [vmem:[%s1362 + $0x70] sm:$0xff]
    %v1378 = vld [vmem:[%s1362 + $0x78] sm:$0xff]
    %v1379 = vld [vmem:[%s1362 + $0x80] sm:$0xff]
    %v1380 = vld [vmem:[%s1362 + $0x88] sm:$0xff]
    %v1381 = vld [vmem:[%s1362 + $0x90] sm:$0xff]
    %v1382 = vld [vmem:[%s1362 + $0x98] sm:$0xff]
    %v1383 = vld [vmem:[%s1362 + $0xa0] sm:$0xff]
    %v1384 = vld [vmem:[%s1362 + $0xa8] sm:$0xff]
    %v1385 = vld [vmem:[%s1362 + $0xb0] sm:$0xff]
    %v1386 = vld [vmem:[%s1362 + $0xb8] sm:$0xff]
    %v1387 = vld [vmem:[%s1362 + $0xc0] sm:$0xff]
    %v1388 = vld [vmem:[%s1362 + $0xc8] sm:$0xff]
    %v1389 = vld [vmem:[%s1362 + $0xd0] sm:$0xff]
    %v1390 = vld [vmem:[%s1362 + $0xd8] sm:$0xff]
    %v1391 = vld [vmem:[%s1362 + $0xe0] sm:$0xff]
    %v1392 = vld [vmem:[%s1362 + $0xe8] sm:$0xff]
    %v1393 = vld [vmem:[%s1362 + $0xf0] sm:$0xff]
    %v1394 = vld [vmem:[%s1362 + $0xf8] sm:$0xff]
    %1395 = vmatprep.subr.mxu0 0.0
    %1396 = vmatpush1.msra.mxu0 %v1363
    %1397 = vmatprep.subr.mxu0 0.0
    %1398 = vmatpush1.msra.mxu0 %v1364
    %1399 = vmatprep.subr.mxu0 0.0
    %1400 = vmatpush1.msra.mxu0 %v1365
    %1401 = vmatprep.subr.mxu0 0.0
    %1402 = vmatpush1.msra.mxu0 %v1366
    %1403 = vmatprep.subr.mxu0 0.0
    %1404 = vmatpush1.msra.mxu0 %v1367
    %1405 = vmatprep.subr.mxu0 0.0
    %1406 = vmatpush1.msra.mxu0 %v1368
    %1407 = vmatprep.subr.mxu0 0.0
    %1408 = vmatpush1.msra.mxu0 %v1369
    %1409 = vmatprep.subr.mxu0 0.0
    %1410 = vmatpush1.msra.mxu0 %v1370
    %1411 = vmatprep.subr.mxu0 0.0
    %1412 = vmatpush1.msra.mxu0 %v1371
    %1413 = vmatprep.subr.mxu0 0.0
    %1414 = vmatpush1.msra.mxu0 %v1372
    %1415 = vmatprep.subr.mxu0 0.0
    %1416 = vmatpush1.msra.mxu0 %v1373
    %1417 = vmatprep.subr.mxu0 0.0
    %1418 = vmatpush1.msra.mxu0 %v1374
    %1419 = vmatprep.subr.mxu0 0.0
    %1420 = vmatpush1.msra.mxu0 %v1375
    %1421 = vmatprep.subr.mxu0 0.0
    %1422 = vmatpush1.msra.mxu0 %v1376
    %1423 = vmatprep.subr.mxu0 0.0
    %1424 = vmatpush1.msra.mxu0 %v1377
    %1425 = vmatprep.subr.mxu0 0.0
    %1426 = vmatpush1.msra.mxu0 %v1378
    %1427 = vmatprep.subr.mxu0 0.0
    %1428 = vmatpush1.msra.mxu0 %v1379
    %1429 = vmatprep.subr.mxu0 0.0
    %1430 = vmatpush1.msra.mxu0 %v1380
    %1431 = vmatprep.subr.mxu0 0.0
    %1432 = vmatpush1.msra.mxu0 %v1381
    %1433 = vmatprep.subr.mxu0 0.0
    %1434 = vmatpush1.msra.mxu0 %v1382
    %1435 = vmatprep.subr.mxu0 0.0
    %1436 = vmatpush1.msra.mxu0 %v1383
    %1437 = vmatprep.subr.mxu0 0.0
    %1438 = vmatpush1.msra.mxu0 %v1384
    %1439 = vmatprep.subr.mxu0 0.0
    %1440 = vmatpush1.msra.mxu0 %v1385
    %1441 = vmatprep.subr.mxu0 0.0
    %1442 = vmatpush1.msra.mxu0 %v1386
    %1443 = vmatprep.subr.mxu0 0.0
    %1444 = vmatpush1.msra.mxu0 %v1387
    %1445 = vmatprep.subr.mxu0 0.0
    %1446 = vmatpush1.msra.mxu0 %v1388
    %1447 = vmatprep.subr.mxu0 0.0
    %1448 = vmatpush1.msra.mxu0 %v1389
    %1449 = vmatprep.subr.mxu0 0.0
    %1450 = vmatpush1.msra.mxu0 %v1390
    %1451 = vmatprep.subr.mxu0 0.0
    %1452 = vmatpush1.msra.mxu0 %v1391
    %1453 = vmatprep.subr.mxu0 0.0
    %1454 = vmatpush1.msra.mxu0 %v1392
    %1455 = vmatprep.subr.mxu0 0.0
    %1456 = vmatpush1.msra.mxu0 %v1393
    %1457 = vmatprep.subr.mxu0 0.0
    %1458 = vmatpush1.msra.mxu0 %v1394
    %1459 = vmatprep.mubr.f32.mxu0 %v613
    %1460 = vmatmul.mubr.f32.gmra.mrb[0].mxu0 %v612
    %v1461 = vpop.f32.mrb[0].mxu0
    %v1462 = vadd.f32 0.0, %v1461
    %v1463 = vpop.f32.mrb[0].mxu0
    %1464 = vmatprep.mubr.f32.mxu0 %v617
    %1465 = vmatmul.mubr.f32.gmra.mrb[0].mxu0 %v616
    %v1466 = vpop.f32.mrb[0].mxu0
    %v1467 = vadd.f32 0.0, %v1466
    %v1468 = vpop.f32.mrb[0].mxu0
    %1469 = vmatprep.mubr.f32.mxu0 %v621
    %1470 = vmatmul.mubr.f32.gmra.mrb[0].mxu0 %v620
    %v1471 = vpop.f32.mrb[0].mxu0
    %v1472 = vadd.f32 0.0, %v1471
    %v1473 = vpop.f32.mrb[0].mxu0
    %1474 = vmatprep.mubr.f32.mxu0 %v625
    %1475 = vmatmul.mubr.f32.gmra.mrb[0].mxu0 %v624
    %v1476 = vpop.f32.mrb[0].mxu0
    %v1477 = vadd.f32 0.0, %v1476
    %v1478 = vpop.f32.mrb[0].mxu0
    %1479 = vdwg.mxu0
    %1480 = vmatprep.subr.mxu0 0.0
    %1481 = vmatpush1.msra.mxu0 %v1462
    %1482 = vmatprep.subr.mxu0 0.0
    %1483 = vmatpush1.msra.mxu0 %v1467
    %1484 = vmatprep.subr.mxu0 0.0
    %1485 = vmatpush1.msra.mxu0 %v1472
    %1486 = vmatprep.subr.mxu0 0.0
    %1487 = vmatpush1.msra.mxu0 %v1477
    %1488 = vmatprep.subr.mxu0 0.0
    %1489 = vmatpush1.msra.mxu0 0.0
    %1490 = vmatprep.subr.mxu0 0.0
    %1491 = vmatpush1.msra.mxu0 0.0
    %1492 = vmatprep.subr.mxu0 0.0
    %1493 = vmatpush1.msra.mxu0 0.0
    %1494 = vmatprep.subr.mxu0 0.0
    %1495 = vmatpush1.msra.mxu0 0.0
    %1496 = vmatprep.subr.mxu0 0.0
    %1497 = vmatpush1.msra.mxu0 0.0
    %1498 = vmatprep.subr.mxu0 0.0
    %1499 = vmatpush1.msra.mxu0 0.0
    %1500 = vmatprep.subr.mxu0 0.0
    %1501 = vmatpush1.msra.mxu0 0.0
    %1502 = vmatprep.subr.mxu0 0.0
    %1503 = vmatpush1.msra.mxu0 0.0
    %1504 = vmatprep.subr.mxu0 0.0
    %1505 = vmatpush1.msra.mxu0 0.0
    %1506 = vmatprep.subr.mxu0 0.0
    %1507 = vmatpush1.msra.mxu0 0.0
    %1508 = vmatprep.subr.mxu0 0.0
    %1509 = vmatpush1.msra.mxu0 0.0
    %1510 = vmatprep.subr.mxu0 0.0
    %1511 = vmatpush1.msra.mxu0 0.0
    %1512 = vmatprep.subr.mxu0 0.0
    %1513 = vmatpush1.msra.mxu0 0.0
    %1514 = vmatprep.subr.mxu0 0.0
    %1515 = vmatpush1.msra.mxu0 0.0
    %1516 = vmatprep.subr.mxu0 0.0
    %1517 = vmatpush1.msra.mxu0 0.0
    %1518 = vmatprep.subr.mxu0 0.0
    %1519 = vmatpush1.msra.mxu0 0.0
    %1520 = vmatprep.subr.mxu0 0.0
    %1521 = vmatpush1.msra.mxu0 0.0
    %1522 = vmatprep.subr.mxu0 0.0
    %1523 = vmatpush1.msra.mxu0 0.0
    %1524 = vmatprep.subr.mxu0 0.0
    %1525 = vmatpush1.msra.mxu0 0.0
    %1526 = vmatprep.subr.mxu0 0.0
    %1527 = vmatpush1.msra.mxu0 0.0
    %1528 = vmatprep.subr.mxu0 0.0
    %1529 = vmatpush1.msra.mxu0 0.0
    %1530 = vmatprep.subr.mxu0 0.0
    %1531 = vmatpush1.msra.mxu0 0.0
    %1532 = vmatprep.subr.mxu0 0.0
    %1533 = vmatpush1.msra.mxu0 0.0
    %1534 = vmatprep.subr.mxu0 0.0
    %1535 = vmatpush1.msra.mxu0 0.0
    %1536 = vmatprep.subr.mxu0 0.0
    %1537 = vmatpush1.msra.mxu0 0.0
    %1538 = vmatprep.subr.mxu0 0.0
    %1539 = vmatpush1.msra.mxu0 0.0
    %1540 = vmatprep.subr.mxu0 0.0
    %1541 = vmatpush1.msra.mxu0 0.0
    %1542 = vmatprep.subr.mxu0 0.0
    %1543 = vmatpush1.msra.mxu0 0.0
    %1544 = vmatprep.mubr.f32.mxu0 0.0
    %1545 = vmatmul.mubr.f32.gmra.mrb[0].mxu0 %v841
    %v1546 = vpop.f32.mrb[0].mxu0
    %v1547 = vadd.f32 0.0, %v1546
    %v1548 = vpop.f32.mrb[0].mxu0
    %1549 = vmatprep.mubr.f32.mxu0 0.0
    %1550 = vmatmul.mubr.f32.gmra.mrb[0].mxu0 %v844
    %v1551 = vpop.f32.mrb[0].mxu0
    %v1552 = vadd.f32 0.0, %v1551
    %v1553 = vpop.f32.mrb[0].mxu0
    %1554 = vmatprep.mubr.f32.mxu0 0.0
    %1555 = vmatmul.mubr.f32.gmra.mrb[0].mxu0 %v847
    %v1556 = vpop.f32.mrb[0].mxu0
    %v1557 = vadd.f32 0.0, %v1556
    %v1558 = vpop.f32.mrb[0].mxu0
    %1559 = vmatprep.mubr.f32.mxu0 0.0
    %1560 = vmatmul.mubr.f32.gmra.mrb[0].mxu0 %v850
    %v1561 = vpop.f32.mrb[0].mxu0
    %v1562 = vadd.f32 0.0, %v1561
    %v1563 = vpop.f32.mrb[0].mxu0
    %1564 = vmatprep.mubr.f32.mxu0 0.0
    %1565 = vmatmul.mubr.f32.gmra.mrb[0].mxu0 %v853
    %v1566 = vpop.f32.mrb[0].mxu0
    %v1567 = vadd.f32 0.0, %v1566
    %v1568 = vpop.f32.mrb[0].mxu0
    %1569 = vmatprep.mubr.f32.mxu0 0.0
    %1570 = vmatmul.mubr.f32.gmra.mrb[0].mxu0 %v856
    %v1571 = vpop.f32.mrb[0].mxu0
    %v1572 = vadd.f32 0.0, %v1571
    %v1573 = vpop.f32.mrb[0].mxu0
    %1574 = vmatprep.mubr.f32.mxu0 0.0
    %1575 = vmatmul.mubr.f32.gmra.mrb[0].mxu0 %v859
    %v1576 = vpop.f32.mrb[0].mxu0
    %v1577 = vadd.f32 0.0, %v1576
    %v1578 = vpop.f32.mrb[0].mxu0
    %1579 = vmatprep.mubr.f32.mxu0 0.0
    %1580 = vmatmul.mubr.f32.gmra.mrb[0].mxu0 %v862
    %v1581 = vpop.f32.mrb[0].mxu0
    %v1582 = vadd.f32 0.0, %v1581
    %v1583 = vpop.f32.mrb[0].mxu0
    %1584 = vmatprep.mubr.f32.mxu0 0.0
    %1585 = vmatmul.mubr.f32.gmra.mrb[0].mxu0 %v865
    %v1586 = vpop.f32.mrb[0].mxu0
    %v1587 = vadd.f32 0.0, %v1586
    %v1588 = vpop.f32.mrb[0].mxu0
    %1589 = vmatprep.mubr.f32.mxu0 0.0
    %1590 = vmatmul.mubr.f32.gmra.mrb[0].mxu0 %v868
    %v1591 = vpop.f32.mrb[0].mxu0
    %v1592 = vadd.f32 0.0, %v1591
    %v1593 = vpop.f32.mrb[0].mxu0
    %1594 = vmatprep.mubr.f32.mxu0 0.0
    %1595 = vmatmul.mubr.f32.gmra.mrb[0].mxu0 %v871
    %v1596 = vpop.f32.mrb[0].mxu0
    %v1597 = vadd.f32 0.0, %v1596
    %v1598 = vpop.f32.mrb[0].mxu0
    %1599 = vmatprep.mubr.f32.mxu0 0.0
    %1600 = vmatmul.mubr.f32.gmra.mrb[0].mxu0 %v874
    %v1601 = vpop.f32.mrb[0].mxu0
    %v1602 = vadd.f32 0.0, %v1601
    %v1603 = vpop.f32.mrb[0].mxu0
    %1604 = vmatprep.mubr.f32.mxu0 0.0
    %1605 = vmatmul.mubr.f32.gmra.mrb[0].mxu0 %v877
    %v1606 = vpop.f32.mrb[0].mxu0
    %v1607 = vadd.f32 0.0, %v1606
    %v1608 = vpop.f32.mrb[0].mxu0
    %1609 = vmatprep.mubr.f32.mxu0 0.0
    %1610 = vmatmul.mubr.f32.gmra.mrb[0].mxu0 %v880
    %v1611 = vpop.f32.mrb[0].mxu0
    %v1612 = vadd.f32 0.0, %v1611
    %v1613 = vpop.f32.mrb[0].mxu0
    %1614 = vmatprep.mubr.f32.mxu0 0.0
    %1615 = vmatmul.mubr.f32.gmra.mrb[0].mxu0 %v883
    %v1616 = vpop.f32.mrb[0].mxu0
    %v1617 = vadd.f32 0.0, %v1616
    %v1618 = vpop.f32.mrb[0].mxu0
    %1619 = vmatprep.mubr.f32.mxu0 0.0
    %1620 = vmatmul.mubr.f32.gmra.mrb[0].mxu0 %v886
    %v1621 = vpop.f32.mrb[0].mxu0
    %v1622 = vadd.f32 0.0, %v1621
    %v1623 = vpop.f32.mrb[0].mxu0
    %1624 = vmatprep.mubr.f32.mxu0 0.0
    %1625 = vmatmul.mubr.f32.gmra.mrb[0].mxu0 %v889
    %v1626 = vpop.f32.mrb[0].mxu0
    %v1627 = vadd.f32 0.0, %v1626
    %v1628 = vpop.f32.mrb[0].mxu0
    %1629 = vmatprep.mubr.f32.mxu0 0.0
    %1630 = vmatmul.mubr.f32.gmra.mrb[0].mxu0 %v892
    %v1631 = vpop.f32.mrb[0].mxu0
    %v1632 = vadd.f32 0.0, %v1631
    %v1633 = vpop.f32.mrb[0].mxu0
    %1634 = vmatprep.mubr.f32.mxu0 0.0
    %1635 = vmatmul.mubr.f32.gmra.mrb[0].mxu0 %v895
    %v1636 = vpop.f32.mrb[0].mxu0
    %v1637 = vadd.f32 0.0, %v1636
    %v1638 = vpop.f32.mrb[0].mxu0
    %1639 = vmatprep.mubr.f32.mxu0 0.0
    %1640 = vmatmul.mubr.f32.gmra.mrb[0].mxu0 %v898
    %v1641 = vpop.f32.mrb[0].mxu0
    %v1642 = vadd.f32 0.0, %v1641
    %v1643 = vpop.f32.mrb[0].mxu0
    %1644 = vmatprep.mubr.f32.mxu0 0.0
    %1645 = vmatmul.mubr.f32.gmra.mrb[0].mxu0 %v901
    %v1646 = vpop.f32.mrb[0].mxu0
    %v1647 = vadd.f32 0.0, %v1646
    %v1648 = vpop.f32.mrb[0].mxu0
    %1649 = vmatprep.mubr.f32.mxu0 0.0
    %1650 = vmatmul.mubr.f32.gmra.mrb[0].mxu0 %v904
    %v1651 = vpop.f32.mrb[0].mxu0
    %v1652 = vadd.f32 0.0, %v1651
    %v1653 = vpop.f32.mrb[0].mxu0
    %1654 = vmatprep.mubr.f32.mxu0 0.0
    %1655 = vmatmul.mubr.f32.gmra.mrb[0].mxu0 %v907
    %v1656 = vpop.f32.mrb[0].mxu0
    %v1657 = vadd.f32 0.0, %v1656
    %v1658 = vpop.f32.mrb[0].mxu0
    %1659 = vmatprep.mubr.f32.mxu0 0.0
    %1660 = vmatmul.mubr.f32.gmra.mrb[0].mxu0 %v910
    %v1661 = vpop.f32.mrb[0].mxu0
    %v1662 = vadd.f32 0.0, %v1661
    %v1663 = vpop.f32.mrb[0].mxu0
    %1664 = vmatprep.mubr.f32.mxu0 0.0
    %1665 = vmatmul.mubr.f32.gmra.mrb[0].mxu0 %v913
    %v1666 = vpop.f32.mrb[0].mxu0
    %v1667 = vadd.f32 0.0, %v1666
    %v1668 = vpop.f32.mrb[0].mxu0
    %1669 = vmatprep.mubr.f32.mxu0 0.0
    %1670 = vmatmul.mubr.f32.gmra.mrb[0].mxu0 %v916
    %v1671 = vpop.f32.mrb[0].mxu0
    %v1672 = vadd.f32 0.0, %v1671
    %v1673 = vpop.f32.mrb[0].mxu0
    %1674 = vmatprep.mubr.f32.mxu0 0.0
    %1675 = vmatmul.mubr.f32.gmra.mrb[0].mxu0 %v919
    %v1676 = vpop.f32.mrb[0].mxu0
    %v1677 = vadd.f32 0.0, %v1676
    %v1678 = vpop.f32.mrb[0].mxu0
    %1679 = vmatprep.mubr.f32.mxu0 0.0
    %1680 = vmatmul.mubr.f32.gmra.mrb[0].mxu0 %v922
    %v1681 = vpop.f32.mrb[0].mxu0
    %v1682 = vadd.f32 0.0, %v1681
    %v1683 = vpop.f32.mrb[0].mxu0
    %1684 = vmatprep.mubr.f32.mxu0 0.0
    %1685 = vmatmul.mubr.f32.gmra.mrb[0].mxu0 %v925
    %v1686 = vpop.f32.mrb[0].mxu0
    %v1687 = vadd.f32 0.0, %v1686
    %v1688 = vpop.f32.mrb[0].mxu0
    %1689 = vmatprep.mubr.f32.mxu0 0.0
    %1690 = vmatmul.mubr.f32.gmra.mrb[0].mxu0 %v928
    %v1691 = vpop.f32.mrb[0].mxu0
    %v1692 = vadd.f32 0.0, %v1691
    %v1693 = vpop.f32.mrb[0].mxu0
    %1694 = vmatprep.mubr.f32.mxu0 0.0
    %1695 = vmatmul.mubr.f32.gmra.mrb[0].mxu0 %v931
    %v1696 = vpop.f32.mrb[0].mxu0
    %v1697 = vadd.f32 0.0, %v1696
    %v1698 = vpop.f32.mrb[0].mxu0
    %1699 = vmatprep.mubr.f32.mxu0 0.0
    %1700 = vmatmul.mubr.f32.gmra.mrb[0].mxu0 %v934
    %v1701 = vpop.f32.mrb[0].mxu0
    %v1702 = vadd.f32 0.0, %v1701
    %v1703 = vpop.f32.mrb[0].mxu0
    %1704 = vdwg.mxu0
    %v1705 = vmul.f32 %v1547, %v658
    %v1706 = vmul.f32 %v1552, %v659
    %v1707 = vmul.f32 %v1557, %v660
    %v1708 = vmul.f32 %v1562, %v661
    %v1709 = vmul.f32 %v1567, %v662
    %v1710 = vmul.f32 %v1572, %v663
    %v1711 = vmul.f32 %v1577, %v664
    %v1712 = vmul.f32 %v1582, %v665
    %v1713 = vmul.f32 %v1587, %v666
    %v1714 = vmul.f32 %v1592, %v667
    %v1715 = vmul.f32 %v1597, %v668
    %v1716 = vmul.f32 %v1602, %v669
    %v1717 = vmul.f32 %v1607, %v670
    %v1718 = vmul.f32 %v1612, %v671
    %v1719 = vmul.f32 %v1617, %v672
    %v1720 = vmul.f32 %v1622, %v673
    %v1721 = vmul.f32 %v1627, %v674
    %v1722 = vmul.f32 %v1632, %v675
    %v1723 = vmul.f32 %v1637, %v676
    %v1724 = vmul.f32 %v1642, %v677
    %v1725 = vmul.f32 %v1647, %v678
    %v1726 = vmul.f32 %v1652, %v679
    %v1727 = vmul.f32 %v1657, %v680
    %v1728 = vmul.f32 %v1662, %v681
    %v1729 = vmul.f32 %v1667, %v682
    %v1730 = vmul.f32 %v1672, %v683
    %v1731 = vmul.f32 %v1677, %v684
    %v1732 = vmul.f32 %v1682, %v685
    %v1733 = vmul.f32 %v1687, %v686
    %v1734 = vmul.f32 %v1692, %v687
    %v1735 = vmul.f32 %v1697, %v688
    %v1736 = vmul.f32 %v1702, %v689
    %v1737 = vsel %vm1193, %v1705, 0.0
    %1738 = vadd.xlane.f32.xlu0 %v1737
    %v1739 = vpop.xlane.xlu0 %1738
    %v1740 = vsel %vm1193, %v1706, 0.0
    %1741 = vadd.xlane.f32.xlu0 %v1740
    %v1742 = vpop.xlane.xlu0 %1741
    %v1743 = vsel %vm1193, %v1707, 0.0
    %1744 = vadd.xlane.f32.xlu0 %v1743
    %v1745 = vpop.xlane.xlu0 %1744
    %v1746 = vsel %vm1193, %v1708, 0.0
    %1747 = vadd.xlane.f32.xlu0 %v1746
    %v1748 = vpop.xlane.xlu0 %1747
    %v1749 = vsel %vm1193, %v1709, 0.0
    %1750 = vadd.xlane.f32.xlu0 %v1749
    %v1751 = vpop.xlane.xlu0 %1750
    %v1752 = vsel %vm1193, %v1710, 0.0
    %1753 = vadd.xlane.f32.xlu0 %v1752
    %v1754 = vpop.xlane.xlu0 %1753
    %v1755 = vsel %vm1193, %v1711, 0.0
    %1756 = vadd.xlane.f32.xlu0 %v1755
    %v1757 = vpop.xlane.xlu0 %1756
    %v1758 = vsel %vm1193, %v1712, 0.0
    %1759 = vadd.xlane.f32.xlu0 %v1758
    %v1760 = vpop.xlane.xlu0 %1759
    %v1761 = vsel %vm1193, %v1713, 0.0
    %1762 = vadd.xlane.f32.xlu0 %v1761
    %v1763 = vpop.xlane.xlu0 %1762
    %v1764 = vsel %vm1193, %v1714, 0.0
    %1765 = vadd.xlane.f32.xlu0 %v1764
    %v1766 = vpop.xlane.xlu0 %1765
    %v1767 = vsel %vm1193, %v1715, 0.0
    %1768 = vadd.xlane.f32.xlu0 %v1767
    %v1769 = vpop.xlane.xlu0 %1768
    %v1770 = vsel %vm1193, %v1716, 0.0
    %1771 = vadd.xlane.f32.xlu0 %v1770
    %v1772 = vpop.xlane.xlu0 %1771
    %v1773 = vsel %vm1193, %v1717, 0.0
    %1774 = vadd.xlane.f32.xlu0 %v1773
    %v1775 = vpop.xlane.xlu0 %1774
    %v1776 = vsel %vm1193, %v1718, 0.0
    %1777 = vadd.xlane.f32.xlu0 %v1776
    %v1778 = vpop.xlane.xlu0 %1777
    %v1779 = vsel %vm1193, %v1719, 0.0
    %1780 = vadd.xlane.f32.xlu0 %v1779
    %v1781 = vpop.xlane.xlu0 %1780
    %v1782 = vsel %vm1193, %v1720, 0.0
    %1783 = vadd.xlane.f32.xlu0 %v1782
    %v1784 = vpop.xlane.xlu0 %1783
    %v1785 = vsel %vm1193, %v1721, 0.0
    %1786 = vadd.xlane.f32.xlu0 %v1785
    %v1787 = vpop.xlane.xlu0 %1786
    %v1788 = vsel %vm1193, %v1722, 0.0
    %1789 = vadd.xlane.f32.xlu0 %v1788
    %v1790 = vpop.xlane.xlu0 %1789
    %v1791 = vsel %vm1193, %v1723, 0.0
    %1792 = vadd.xlane.f32.xlu0 %v1791
    %v1793 = vpop.xlane.xlu0 %1792
    %v1794 = vsel %vm1193, %v1724, 0.0
    %1795 = vadd.xlane.f32.xlu0 %v1794
    %v1796 = vpop.xlane.xlu0 %1795
    %v1797 = vsel %vm1193, %v1725, 0.0
    %1798 = vadd.xlane.f32.xlu0 %v1797
    %v1799 = vpop.xlane.xlu0 %1798
    %v1800 = vsel %vm1193, %v1726, 0.0
    %1801 = vadd.xlane.f32.xlu0 %v1800
    %v1802 = vpop.xlane.xlu0 %1801
    %v1803 = vsel %vm1193, %v1727, 0.0
    %1804 = vadd.xlane.f32.xlu0 %v1803
    %v1805 = vpop.xlane.xlu0 %1804
    %v1806 = vsel %vm1193, %v1728, 0.0
    %1807 = vadd.xlane.f32.xlu0 %v1806
    %v1808 = vpop.xlane.xlu0 %1807
    %v1809 = vsel %vm1193, %v1729, 0.0
    %1810 = vadd.xlane.f32.xlu0 %v1809
    %v1811 = vpop.xlane.xlu0 %1810
    %v1812 = vsel %vm1193, %v1730, 0.0
    %1813 = vadd.xlane.f32.xlu0 %v1812
    %v1814 = vpop.xlane.xlu0 %1813
    %v1815 = vsel %vm1193, %v1731, 0.0
    %1816 = vadd.xlane.f32.xlu0 %v1815
    %v1817 = vpop.xlane.xlu0 %1816
    %v1818 = vsel %vm1193, %v1732, 0.0
    %1819 = vadd.xlane.f32.xlu0 %v1818
    %v1820 = vpop.xlane.xlu0 %1819
    %v1821 = vsel %vm1193, %v1733, 0.0
    %1822 = vadd.xlane.f32.xlu0 %v1821
    %v1823 = vpop.xlane.xlu0 %1822
    %v1824 = vsel %vm1193, %v1734, 0.0
    %1825 = vadd.xlane.f32.xlu0 %v1824
    %v1826 = vpop.xlane.xlu0 %1825
    %v1827 = vsel %vm1193, %v1735, 0.0
    %1828 = vadd.xlane.f32.xlu0 %v1827
    %v1829 = vpop.xlane.xlu0 %1828
    %v1830 = vsel %vm1287, %v1736, 0.0
    %1831 = vadd.xlane.f32.xlu0 %v1830
    %v1832 = vpop.xlane.xlu0 %1831
    %v1833 = vmul.f32 %v1739, %v690
    %v1834 = vmul.f32 %v1742, %v691
    %v1835 = vmul.f32 %v1745, %v692
    %v1836 = vmul.f32 %v1748, %v693
    %v1837 = vmul.f32 %v1751, %v694
    %v1838 = vmul.f32 %v1754, %v695
    %v1839 = vmul.f32 %v1757, %v696
    %v1840 = vmul.f32 %v1760, %v697
    %v1841 = vmul.f32 %v1763, %v698
    %v1842 = vmul.f32 %v1766, %v699
    %v1843 = vmul.f32 %v1769, %v700
    %v1844 = vmul.f32 %v1772, %v701
    %v1845 = vmul.f32 %v1775, %v702
    %v1846 = vmul.f32 %v1778, %v703
    %v1847 = vmul.f32 %v1781, %v704
    %v1848 = vmul.f32 %v1784, %v705
    %v1849 = vmul.f32 %v1787, %v706
    %v1850 = vmul.f32 %v1790, %v707
    %v1851 = vmul.f32 %v1793, %v708
    %v1852 = vmul.f32 %v1796, %v709
    %v1853 = vmul.f32 %v1799, %v710
    %v1854 = vmul.f32 %v1802, %v711
    %v1855 = vmul.f32 %v1805, %v712
    %v1856 = vmul.f32 %v1808, %v713
    %v1857 = vmul.f32 %v1811, %v714
    %v1858 = vmul.f32 %v1814, %v715
    %v1859 = vmul.f32 %v1817, %v716
    %v1860 = vmul.f32 %v1820, %v717
    %v1861 = vmul.f32 %v1823, %v718
    %v1862 = vmul.f32 %v1826, %v719
    %v1863 = vmul.f32 %v1829, %v720
    %v1864 = vmul.f32 %v1832, %v721
    %v1865 = vadd.f32 %v1833, %v1834
    %v1866 = vadd.f32 %v1865, %v1835
    %v1867 = vadd.f32 %v1866, %v1836
    %v1868 = vadd.f32 %v1867, %v1837
    %v1869 = vadd.f32 %v1868, %v1838
    %v1870 = vadd.f32 %v1869, %v1839
    %v1871 = vadd.f32 %v1870, %v1840
    %v1872 = vadd.f32 %v1871, %v1841
    %v1873 = vadd.f32 %v1872, %v1842
    %v1874 = vadd.f32 %v1873, %v1843
    %v1875 = vadd.f32 %v1874, %v1844
    %v1876 = vadd.f32 %v1875, %v1845
    %v1877 = vadd.f32 %v1876, %v1846
    %v1878 = vadd.f32 %v1877, %v1847
    %v1879 = vadd.f32 %v1878, %v1848
    %v1880 = vadd.f32 %v1879, %v1849
    %v1881 = vadd.f32 %v1880, %v1850
    %v1882 = vadd.f32 %v1881, %v1851
    %v1883 = vadd.f32 %v1882, %v1852
    %v1884 = vadd.f32 %v1883, %v1853
    %v1885 = vadd.f32 %v1884, %v1854
    %v1886 = vadd.f32 %v1885, %v1855
    %v1887 = vadd.f32 %v1886, %v1856
    %v1888 = vadd.f32 %v1887, %v1857
    %v1889 = vadd.f32 %v1888, %v1858
    %v1890 = vadd.f32 %v1889, %v1859
    %v1891 = vadd.f32 %v1890, %v1860
    %v1892 = vadd.f32 %v1891, %v1861
    %v1893 = vadd.f32 %v1892, %v1862
    %v1894 = vadd.f32 %v1893, %v1863
    %v1895 = vsel %vm1353, %v1864, 0.0
    %v1896 = vadd.f32 %v1894, %v1895
    %v1897 = vrot.slane %v1896, 4
    %v1898 = vadd.f32 %v1896, %v1897
    %v1899 = vrot.slane %v1898, 2
    %v1900 = vadd.f32 %v1898, %v1899
    %v1901 = vrot.slane %v1900, 1
    %v1902 = vadd.f32 %v1900, %v1901
    %vm1903 = vcmask 1040384
    %v1904 = vsel %vm1903, %v1361, %v1902
    %v1905 = vld [vmem:[%s9] sm:$0x1]
    %v1907 = vlaneseq
    %v1908 = vshrl.u32 %v1907, 7
    %v1909 = vsub.s32 0, %v1908
    %v1910 = vrot.slane %v1905, %v1909
    %v1912 = vadd.f32 %v1904, %v1910
    %1913 = vst [vmem:[#allocation2] sm:$0x3] %v1912
    // Predicated region
    $region42: #{roi_classifier_forward.1} parent=1 // pred_check
      _
    $region43: #{roi_classifier_forward.1} parent=1 // pred_check_branch
      %1915 = sbr.rel (0) target = $region45
    $region44: #{roi_classifier_forward.1} parent=1 // pred_region
      %s1917 = ssub.s32 32, 32
      %1918 = vsyncadd [#allocation3], %s1917
      %s1920 = sshll.u32 [#allocation2], 4
      %s1921 = int_to_ptr.vmem [resolvable:$true] %s1920
      %1923 = dma.vmem_to_hbm [thread:$0]  %s1921, 32, %s10, [#allocation3]
    $region45: #{roi_classifier_forward.1} parent=1 // pred_fallthru
      _
    // Predicated region
    $region46: #{roi_classifier_forward.1} parent=1 // pred_check
      _
    $region47: #{roi_classifier_forward.1} parent=1 // pred_check_branch
      %1925 = sbr.rel (0) target = $region49
    $region48: #{roi_classifier_forward.1} parent=1 // pred_region
      %1926 = dma.done [#allocation3], 32
    $region49: #{roi_classifier_forward.1} parent=1 // pred_fallthru
      _
    %1927 = vsyncpa [#allocation3], 1

</llo_original>
